<compile_context>
chip_gen: v6e
topology: v6e:2x2x1
jax: 0.10.0
libtpu: 0.0.40
codegen_flags: <defaults>
</compile_context>

<pallas_src>
import jax
import jax.numpy as jnp
from jax.experimental import pallas as pl
from jax.experimental.pallas import tpu as pltpu


def soft_routing_kernel(x_ref, w0_ref, b0_ref, w1_ref,
                        wm_ref, bm_ref, g_ref, be_ref,
                        wa_ref, wb_ref, bb_ref, out_ref):
    TB, N, C = x_ref.shape
    x = x_ref[...]                                     # (TB, N, C)
    # Leading-dim collapse only (N % 8 == 0 -> tile-pure, no relayout); gives the
    # MXU one tall (TB*N, C) pass for the first linear.
    x2 = x.reshape(TB * N, C)

    # make_mask: sequence positions whose |x| row-sum is exactly zero.
    mask = (jnp.sum(jnp.abs(x), axis=-1, keepdims=True) == 0.0)      # (TB, N, 1)

    # AttFlat.mlp : FC(C->C) + ReLU  (dropout = identity in eval)
    h = jnp.maximum(
        jnp.dot(x2, w0_ref[...], preferred_element_type=jnp.float32) + b0_ref[...],
        0.0)                                                         # (TB*N, C)

    # C -> 1 glimpse projection as VPU multiply + lane reduce (avoids a 1-column
    # MXU pass).  The +b1 scalar is dropped: softmax over N is shift-invariant,
    # so the result is bit-for-bit unaffected (removes an operand + SMEM load).
    att = jnp.sum(h * w1_ref[...], axis=-1, keepdims=True).reshape(TB, N, 1)

    # masked_fill(-1e9) then softmax over the sequence axis (per batch element).
    att = jnp.where(mask, -1.0e9, att)
    att = att - jnp.max(att, axis=1, keepdims=True)
    e = jnp.exp(att)
    att = e * pl.reciprocal(jnp.sum(e, axis=1, keepdims=True))       # exact

    # Attention-weighted pooling (glimpses = 1): VPU multiply + sublane reduce.
    pooled = jnp.sum(att * x, axis=1)                                # (TB, C)

    # linear_merge
    merged = (jnp.dot(pooled, wm_ref[...], preferred_element_type=jnp.float32)
              + bm_ref[...])

    # openvqa LayerNorm: a_2 * (x - mean) / (std + eps) + b_2, std unbiased.
    mu = jnp.mean(merged, axis=-1, keepdims=True)
    d = merged - mu
    var = jnp.sum(d * d, axis=-1, keepdims=True) * (1.0 / (C - 1))
    inv_std = pl.reciprocal(jnp.sqrt(var) + 1e-6)                    # exact
    xn = g_ref[...] * d * inv_std + be_ref[...]                      # (TB, C)

    # Routing MLP: Linear(C -> C//r, no bias) -> ReLU -> Linear(C//r -> OUT)
    z = jnp.maximum(
        jnp.dot(xn, wa_ref[...], preferred_element_type=jnp.float32), 0.0)
    logits = (jnp.dot(z, wb_ref[...], preferred_element_type=jnp.float32)
              + bb_ref[...])                                         # (TB, OUT)

    # Final softmax over routing choices -- exact division so rows sum to 1.
    logits = logits - jnp.max(logits, axis=-1, keepdims=True)
    e2 = jnp.exp(logits)
    out_ref[...] = e2 / jnp.sum(e2, axis=-1, keepdims=True)


def _pick_batch_tile(B, N, block_b):
    """Pick TB: >=512 matmul rows per step, >=2 grid steps when possible, TB%8==0."""
    tb = min(max(block_b, int(pl.cdiv(512, N))), B)
    if B // 2 >= 8:
        tb = min(tb, B // 2)        # keep >= 2 grid steps (v7x has 2 TensorCores)
        tb = max(8, (tb // 8) * 8)  # (TB, OUT) output block needs TB % 8 == 0
    else:
        tb = B                      # tiny batch: single full-batch step
    return tb


def soft_routing_block(x, params, tau=None, masks=None, block_b=64):
    """x: (B, N, C) float32.  Returns alpha: (B, OUT)."""
    del tau, masks  # unused in the 'attention' + softmax branch
    B, N, C = x.shape
    OUT = params["wb"].shape[1]

    TB = _pick_batch_tile(B, N, block_b)
    Bp = int(pl.cdiv(B, TB)) * TB
    if Bp != B:
        # Zero padding is safe: padded rows are fully masked in the attention
        # softmax (uniform weights over zero rows -> pooled = 0, finite tail)
        # and their outputs are discarded below.
        x = jnp.pad(x, ((0, Bp - B), (0, 0), (0, 0)))

    w1_row = params["w1"].reshape(1, C)    # (C,1) -> (1,C) for the VPU reduce

    # VMEM footprint at these shapes is tiny (x tile = TB*N*C*4 bytes, double
    # buffered, plus ~3 CxC weight tiles); for large C/N raise vmem_limit_bytes
    # via CompilerParams (v7x has 64 MiB physical VMEM vs 128 MiB on v5e/v6e).
    full = lambda shape: pl.BlockSpec(shape, lambda b: (0,) * len(shape))
    grid_spec = pltpu.PrefetchScalarGridSpec(
        num_scalar_prefetch=0,
        grid=(Bp // TB,),
        in_specs=[
            pl.BlockSpec((TB, N, C), lambda b: (b, 0, 0)),          # x
            full((C, C)),                                           # w0
            full((1, C)),                                           # b0
            full((1, C)),                                           # w1 (row form)
            full((C, C)),                                           # wm
            full((1, C)),                                           # bm
            full((1, C)),                                           # gamma
            full((1, C)),                                           # beta
            full((C, C // 2)),                                      # wa
            full((C // 2, OUT)),                                    # wb
            full((1, OUT)),                                         # bb
        ],
        out_specs=pl.BlockSpec((TB, OUT), lambda b: (b, 0)),
    )

    # Advisory cost estimate so XLA can overlap / schedule around the call.
    flops = (2 * Bp * N * C * C          # AttFlat FC
             + 2 * Bp * N * C            # glimpse projection
             + 2 * Bp * N * C            # attention pooling
             + 2 * Bp * C * C            # linear_merge
             + 2 * Bp * C * (C // 2)     # routing fc1
             + 2 * Bp * (C // 2) * OUT)  # routing fc2
    transcendentals = Bp * N + Bp * OUT + Bp      # exps + sqrt
    weight_bytes = 4 * (2 * C * C + C * (C // 2) + (C // 2) * OUT + 6 * C + OUT)
    bytes_accessed = 4 * (Bp * N * C + Bp * OUT) + weight_bytes

    alpha = pl.pallas_call(
        soft_routing_kernel,
        out_shape=jax.ShapeDtypeStruct((Bp, OUT), jnp.float32),
        grid_spec=grid_spec,
        compiler_params=pltpu.CompilerParams(
            dimension_semantics=("parallel",)),
        cost_estimate=pl.CostEstimate(
            flops=int(flops),
            transcendentals=int(transcendentals),
            bytes_accessed=int(bytes_accessed)),
    )(x, params["w0"], params["b0"], w1_row,
      params["wm"], params["bm"], params["gamma"], params["beta"],
      params["wa"], params["wb"], params["bb"])
    return alpha[:B]


def reference(x, p):
    """Pure-JAX reference mirroring the PyTorch forward (eval mode)."""
    mask = (jnp.sum(jnp.abs(x), axis=-1, keepdims=True) == 0.0)       # (B, N, 1)
    h = jnp.maximum(x @ p["w0"] + p["b0"], 0.0)
    att = h @ p["w1"] + p["b1"]                    # reference keeps b1 (kernel drops it)
    att = jnp.where(mask, -1.0e9, att)
    att = jax.nn.softmax(att, axis=1)
    pooled = jnp.sum(att * x, axis=1)                                 # (B, C)
    pooled = pooled @ p["wm"] + p["bm"][0]
    mu = jnp.mean(pooled, axis=-1, keepdims=True)
    d = pooled - mu
    var = jnp.sum(d * d, axis=-1, keepdims=True) / (pooled.shape[-1] - 1)
    xn = p["gamma"][0] * d / (jnp.sqrt(var) + 1e-6) + p["beta"][0]
    z = jnp.maximum(xn @ p["wa"], 0.0)
    logits = z @ p["wb"] + p["bb"][0]
    return jax.nn.softmax(logits, axis=-1)


if __name__ == "__main__":
    # in_channel=64, out_channel=4 (len(ORDERS)), reduction=2, seq N=16, batch 16.
    B, N, C, OUT = 16, 16, 64, 4
    key = jax.random.PRNGKey(0)
    ks = jax.random.split(key, 12)

    x = jax.random.normal(ks[0], (B, N, C), dtype=jnp.float32)
    # Zero out the last row of each batch element so make_mask is exercised.
    x = x.at[:, -1, :].set(0.0)

    s = 0.1
    params = {
        "w0":    s * jax.random.normal(ks[1], (C, C), jnp.float32),
        "b0":    s * jax.random.normal(ks[2], (1, C), jnp.float32),
        "w1":    s * jax.random.normal(ks[3], (C, 1), jnp.float32),
        "b1":    s * jax.random.normal(ks[4], (1, 1), jnp.float32),
        "wm":    s * jax.random.normal(ks[5], (C, C), jnp.float32),
        "bm":    s * jax.random.normal(ks[6], (1, C), jnp.float32),
        "gamma": jnp.ones((1, C), jnp.float32),
        "beta":  jnp.zeros((1, C), jnp.float32),
        "wa":    s * jax.random.normal(ks[7], (C, C // 2), jnp.float32),
        "wb":    s * jax.random.normal(ks[8], (C // 2, OUT), jnp.float32),
        "bb":    s * jax.random.normal(ks[9], (1, OUT), jnp.float32),
    }

    alpha = jax.block_until_ready(soft_routing_block(x, params))
    ref = reference(x, params)

    assert alpha.shape == (B, OUT)
    assert bool(jnp.all(jnp.isfinite(alpha)))
    # Exact softmax division -> rows sum to 1 to f32 precision.
    assert jnp.allclose(jnp.sum(alpha, axis=-1), 1.0, atol=1e-3)
    assert jnp.allclose(alpha, ref, atol=2e-3, rtol=2e-3)
    print("KERNEL_OK")
</pallas_src>

<mosaic_0001>
module attributes {stable_mosaic.version = 11 : i64} {
  func.func @soft_routing_kernel(%arg0: i32, %arg1: memref<8x16x64xf32, #tpu.memory_space<vmem>>, %arg2: memref<64x64xf32, #tpu.memory_space<vmem>>, %arg3: memref<1x64xf32, #tpu.memory_space<vmem>>, %arg4: memref<1x64xf32, #tpu.memory_space<vmem>>, %arg5: memref<64x64xf32, #tpu.memory_space<vmem>>, %arg6: memref<1x64xf32, #tpu.memory_space<vmem>>, %arg7: memref<1x64xf32, #tpu.memory_space<vmem>>, %arg8: memref<1x64xf32, #tpu.memory_space<vmem>>, %arg9: memref<64x32xf32, #tpu.memory_space<vmem>>, %arg10: memref<32x4xf32, #tpu.memory_space<vmem>>, %arg11: memref<1x4xf32, #tpu.memory_space<vmem>>, %arg12: memref<8x4xf32, #tpu.memory_space<vmem>>) attributes {dimension_semantics = [#tpu.dimension_semantics<parallel>], iteration_bounds = array<i64: 2>, scalar_prefetch = 0 : i64, scratch_operands = 0 : i64, tpu.core_type = #tpu.core_type<tc>, window_params = [{transform_indices = @transform_0, window_bounds = array<i64: 8, 16, 64>}, {pipeline_mode = #tpu.pipeline_mode<synchronous>, transform_indices = @transform_1, window_bounds = array<i64: 64, 64>}, {pipeline_mode = #tpu.pipeline_mode<synchronous>, transform_indices = @transform_2, window_bounds = array<i64: 1, 64>}, {pipeline_mode = #tpu.pipeline_mode<synchronous>, transform_indices = @transform_3, window_bounds = array<i64: 1, 64>}, {pipeline_mode = #tpu.pipeline_mode<synchronous>, transform_indices = @transform_4, window_bounds = array<i64: 64, 64>}, {pipeline_mode = #tpu.pipeline_mode<synchronous>, transform_indices = @transform_5, window_bounds = array<i64: 1, 64>}, {pipeline_mode = #tpu.pipeline_mode<synchronous>, transform_indices = @transform_6, window_bounds = array<i64: 1, 64>}, {pipeline_mode = #tpu.pipeline_mode<synchronous>, transform_indices = @transform_7, window_bounds = array<i64: 1, 64>}, {pipeline_mode = #tpu.pipeline_mode<synchronous>, transform_indices = @transform_8, window_bounds = array<i64: 64, 32>}, {pipeline_mode = #tpu.pipeline_mode<synchronous>, transform_indices = @transform_9, window_bounds = array<i64: 32, 4>}, {pipeline_mode = #tpu.pipeline_mode<synchronous>, transform_indices = @transform_10, window_bounds = array<i64: 1, 4>}, {transform_indices = @transform_11, window_bounds = array<i64: 8, 4>}]} {
    %c0 = arith.constant 0 : index
    %c0_0 = arith.constant 0 : index
    %c0_1 = arith.constant 0 : index
    %0 = vector.load %arg1[%c0, %c0_0, %c0_1] : memref<8x16x64xf32, #tpu.memory_space<vmem>>, vector<8x16x64xf32>
    %1 = vector.shape_cast %0 : vector<8x16x64xf32> to vector<128x64xf32>
    %2 = math.absf %0 : vector<8x16x64xf32>
    %cst = arith.constant dense<0.000000e+00> : vector<8x16xf32>
    %3 = vector.multi_reduction <add>, %2, %cst [2] : vector<8x16x64xf32> to vector<8x16xf32>
    %4 = vector.shape_cast %3 : vector<8x16xf32> to vector<8x16x1xf32>
    %cst_2 = arith.constant 0.000000e+00 : f32
    %5 = vector.broadcast %cst_2 : f32 to vector<8x16x1xf32>
    %6 = arith.cmpf oeq, %4, %5 : vector<8x16x1xf32>
    %c0_3 = arith.constant 0 : index
    %c0_4 = arith.constant 0 : index
    %7 = vector.load %arg2[%c0_3, %c0_4] : memref<64x64xf32, #tpu.memory_space<vmem>>, vector<64x64xf32>
    %cst_5 = arith.constant dense<0.000000e+00> : vector<128x64xf32>
    %8 = tpu.matmul %1, %7, %cst_5 {dimension_numbers = #tpu.dot_dimension_numbers<[1], [0], [0], [1], [0, 0, 1, 1], [], []>} : vector<128x64xf32>, vector<64x64xf32>, vector<128x64xf32> -> vector<128x64xf32>
    %c0_6 = arith.constant 0 : index
    %c0_7 = arith.constant 0 : index
    %9 = vector.load %arg3[%c0_6, %c0_7] : memref<1x64xf32, #tpu.memory_space<vmem>>, vector<1x64xf32>
    %10 = vector.broadcast %9 : vector<1x64xf32> to vector<128x64xf32>
    %11 = arith.addf %8, %10 : vector<128x64xf32>
    %cst_8 = arith.constant 0.000000e+00 : f32
    %12 = vector.broadcast %cst_8 : f32 to vector<128x64xf32>
    %13 = arith.maximumf %11, %12 : vector<128x64xf32>
    %c0_9 = arith.constant 0 : index
    %c0_10 = arith.constant 0 : index
    %14 = vector.load %arg4[%c0_9, %c0_10] : memref<1x64xf32, #tpu.memory_space<vmem>>, vector<1x64xf32>
    %15 = vector.broadcast %14 : vector<1x64xf32> to vector<128x64xf32>
    %16 = arith.mulf %13, %15 : vector<128x64xf32>
    %cst_11 = arith.constant dense<0.000000e+00> : vector<128xf32>
    %17 = vector.multi_reduction <add>, %16, %cst_11 [1] : vector<128x64xf32> to vector<128xf32>
    %18 = vector.shape_cast %17 : vector<128xf32> to vector<128x1xf32>
    %19 = vector.shape_cast %18 : vector<128x1xf32> to vector<8x16x1xf32>
    %cst_12 = arith.constant -1.000000e+09 : f32
    %20 = vector.broadcast %cst_12 : f32 to vector<8x16x1xf32>
    %21 = arith.select %6, %20, %19 : vector<8x16x1xi1>, vector<8x16x1xf32>
    %cst_13 = arith.constant dense<0xFF800000> : vector<8x1xf32>
    %22 = vector.multi_reduction <maximumf>, %21, %cst_13 [1] : vector<8x16x1xf32> to vector<8x1xf32>
    %23 = vector.shape_cast %22 : vector<8x1xf32> to vector<8x1x1xf32>
    %24 = vector.broadcast %23 : vector<8x1x1xf32> to vector<8x16x1xf32>
    %25 = arith.subf %21, %24 : vector<8x16x1xf32>
    %26 = math.exp %25 : vector<8x16x1xf32>
    %cst_14 = arith.constant dense<0.000000e+00> : vector<8x1xf32>
    %27 = vector.multi_reduction <add>, %26, %cst_14 [1] : vector<8x16x1xf32> to vector<8x1xf32>
    %28 = vector.shape_cast %27 : vector<8x1xf32> to vector<8x1x1xf32>
    %29 = tpu.reciprocal %28 : vector<8x1x1xf32> -> vector<8x1x1xf32>
    %30 = vector.broadcast %29 : vector<8x1x1xf32> to vector<8x16x1xf32>
    %31 = arith.mulf %26, %30 : vector<8x16x1xf32>
    %32 = vector.broadcast %31 : vector<8x16x1xf32> to vector<8x16x64xf32>
    %33 = arith.mulf %32, %0 : vector<8x16x64xf32>
    %cst_15 = arith.constant dense<0.000000e+00> : vector<8x64xf32>
    %34 = vector.multi_reduction <add>, %33, %cst_15 [1] : vector<8x16x64xf32> to vector<8x64xf32>
    %c0_16 = arith.constant 0 : index
    %c0_17 = arith.constant 0 : index
    %35 = vector.load %arg5[%c0_16, %c0_17] : memref<64x64xf32, #tpu.memory_space<vmem>>, vector<64x64xf32>
    %cst_18 = arith.constant dense<0.000000e+00> : vector<8x64xf32>
    %36 = tpu.matmul %34, %35, %cst_18 {dimension_numbers = #tpu.dot_dimension_numbers<[1], [0], [0], [1], [0, 0, 1, 1], [], []>} : vector<8x64xf32>, vector<64x64xf32>, vector<8x64xf32> -> vector<8x64xf32>
    %c0_19 = arith.constant 0 : index
    %c0_20 = arith.constant 0 : index
    %37 = vector.load %arg6[%c0_19, %c0_20] : memref<1x64xf32, #tpu.memory_space<vmem>>, vector<1x64xf32>
    %38 = vector.broadcast %37 : vector<1x64xf32> to vector<8x64xf32>
    %39 = arith.addf %36, %38 : vector<8x64xf32>
    %cst_21 = arith.constant dense<0.000000e+00> : vector<8xf32>
    %40 = vector.multi_reduction <add>, %39, %cst_21 [1] : vector<8x64xf32> to vector<8xf32>
    %41 = vector.shape_cast %40 : vector<8xf32> to vector<8x1xf32>
    %cst_22 = arith.constant 6.400000e+01 : f32
    %42 = vector.broadcast %cst_22 : f32 to vector<8x1xf32>
    %43 = arith.divf %41, %42 : vector<8x1xf32>
    %44 = vector.broadcast %43 : vector<8x1xf32> to vector<8x64xf32>
    %45 = arith.subf %39, %44 : vector<8x64xf32>
    %46 = arith.mulf %45, %45 : vector<8x64xf32>
    %cst_23 = arith.constant dense<0.000000e+00> : vector<8xf32>
    %47 = vector.multi_reduction <add>, %46, %cst_23 [1] : vector<8x64xf32> to vector<8xf32>
    %48 = vector.shape_cast %47 : vector<8xf32> to vector<8x1xf32>
    %cst_24 = arith.constant 0.0158730168 : f32
    %49 = vector.broadcast %cst_24 : f32 to vector<8x1xf32>
    %50 = arith.mulf %48, %49 : vector<8x1xf32>
    %51 = math.sqrt %50 : vector<8x1xf32>
    %cst_25 = arith.constant 9.99999997E-7 : f32
    %52 = vector.broadcast %cst_25 : f32 to vector<8x1xf32>
    %53 = arith.addf %51, %52 : vector<8x1xf32>
    %54 = tpu.reciprocal %53 : vector<8x1xf32> -> vector<8x1xf32>
    %c0_26 = arith.constant 0 : index
    %c0_27 = arith.constant 0 : index
    %55 = vector.load %arg7[%c0_26, %c0_27] : memref<1x64xf32, #tpu.memory_space<vmem>>, vector<1x64xf32>
    %56 = vector.broadcast %55 : vector<1x64xf32> to vector<8x64xf32>
    %57 = arith.mulf %56, %45 : vector<8x64xf32>
    %58 = vector.broadcast %54 : vector<8x1xf32> to vector<8x64xf32>
    %59 = arith.mulf %57, %58 : vector<8x64xf32>
    %c0_28 = arith.constant 0 : index
    %c0_29 = arith.constant 0 : index
    %60 = vector.load %arg8[%c0_28, %c0_29] : memref<1x64xf32, #tpu.memory_space<vmem>>, vector<1x64xf32>
    %61 = vector.broadcast %60 : vector<1x64xf32> to vector<8x64xf32>
    %62 = arith.addf %59, %61 : vector<8x64xf32>
    %c0_30 = arith.constant 0 : index
    %c0_31 = arith.constant 0 : index
    %63 = vector.load %arg9[%c0_30, %c0_31] : memref<64x32xf32, #tpu.memory_space<vmem>>, vector<64x32xf32>
    %cst_32 = arith.constant dense<0.000000e+00> : vector<8x32xf32>
    %64 = tpu.matmul %62, %63, %cst_32 {dimension_numbers = #tpu.dot_dimension_numbers<[1], [0], [0], [1], [0, 0, 1, 1], [], []>} : vector<8x64xf32>, vector<64x32xf32>, vector<8x32xf32> -> vector<8x32xf32>
    %cst_33 = arith.constant 0.000000e+00 : f32
    %65 = vector.broadcast %cst_33 : f32 to vector<8x32xf32>
    %66 = arith.maximumf %64, %65 : vector<8x32xf32>
    %c0_34 = arith.constant 0 : index
    %c0_35 = arith.constant 0 : index
    %67 = vector.load %arg10[%c0_34, %c0_35] : memref<32x4xf32, #tpu.memory_space<vmem>>, vector<32x4xf32>
    %cst_36 = arith.constant dense<0.000000e+00> : vector<8x4xf32>
    %68 = tpu.matmul %66, %67, %cst_36 {dimension_numbers = #tpu.dot_dimension_numbers<[1], [0], [0], [1], [0, 0, 1, 1], [], []>} : vector<8x32xf32>, vector<32x4xf32>, vector<8x4xf32> -> vector<8x4xf32>
    %c0_37 = arith.constant 0 : index
    %c0_38 = arith.constant 0 : index
    %69 = vector.load %arg11[%c0_37, %c0_38] : memref<1x4xf32, #tpu.memory_space<vmem>>, vector<1x4xf32>
    %70 = vector.broadcast %69 : vector<1x4xf32> to vector<8x4xf32>
    %71 = arith.addf %68, %70 : vector<8x4xf32>
    %cst_39 = arith.constant dense<0xFF800000> : vector<8xf32>
    %72 = vector.multi_reduction <maximumf>, %71, %cst_39 [1] : vector<8x4xf32> to vector<8xf32>
    %73 = vector.shape_cast %72 : vector<8xf32> to vector<8x1xf32>
    %74 = vector.broadcast %73 : vector<8x1xf32> to vector<8x4xf32>
    %75 = arith.subf %71, %74 : vector<8x4xf32>
    %76 = math.exp %75 : vector<8x4xf32>
    %cst_40 = arith.constant dense<0.000000e+00> : vector<8xf32>
    %77 = vector.multi_reduction <add>, %76, %cst_40 [1] : vector<8x4xf32> to vector<8xf32>
    %78 = vector.shape_cast %77 : vector<8xf32> to vector<8x1xf32>
    %79 = vector.broadcast %78 : vector<8x1xf32> to vector<8x4xf32>
    %80 = arith.divf %76, %79 : vector<8x4xf32>
    %c0_41 = arith.constant 0 : index
    %c0_42 = arith.constant 0 : index
    %81 = vector.load %arg12[%c0_41, %c0_42] : memref<8x4xf32, #tpu.memory_space<vmem>>, vector<8x4xf32>
    tpu.vector_store %arg12[%c0_41, %c0_42], %80 {strides = array<i32>} : memref<8x4xf32, #tpu.memory_space<vmem>>, vector<8x4xf32>,
    return
  }
  func.func @transform_0(%arg0: i32) -> (i32, i32, i32) {
    %c0_i32 = arith.constant 0 : i32
    %c0_i32_0 = arith.constant 0 : i32
    %c0_i32_1 = arith.constant 0 : i32
    return %arg0, %c0_i32, %c0_i32_0 : i32, i32, i32
  }
  func.func @transform_1(%arg0: i32) -> (i32, i32) {
    %c0_i32 = arith.constant 0 : i32
    %c0_i32_0 = arith.constant 0 : i32
    %c0_i32_1 = arith.constant 0 : i32
    return %c0_i32, %c0_i32_0 : i32, i32
  }
  func.func @transform_2(%arg0: i32) -> (i32, i32) {
    %c0_i32 = arith.constant 0 : i32
    %c0_i32_0 = arith.constant 0 : i32
    %c0_i32_1 = arith.constant 0 : i32
    return %c0_i32, %c0_i32_0 : i32, i32
  }
  func.func @transform_3(%arg0: i32) -> (i32, i32) {
    %c0_i32 = arith.constant 0 : i32
    %c0_i32_0 = arith.constant 0 : i32
    %c0_i32_1 = arith.constant 0 : i32
    return %c0_i32, %c0_i32_0 : i32, i32
  }
  func.func @transform_4(%arg0: i32) -> (i32, i32) {
    %c0_i32 = arith.constant 0 : i32
    %c0_i32_0 = arith.constant 0 : i32
    %c0_i32_1 = arith.constant 0 : i32
    return %c0_i32, %c0_i32_0 : i32, i32
  }
  func.func @transform_5(%arg0: i32) -> (i32, i32) {
    %c0_i32 = arith.constant 0 : i32
    %c0_i32_0 = arith.constant 0 : i32
    %c0_i32_1 = arith.constant 0 : i32
    return %c0_i32, %c0_i32_0 : i32, i32
  }
  func.func @transform_6(%arg0: i32) -> (i32, i32) {
    %c0_i32 = arith.constant 0 : i32
    %c0_i32_0 = arith.constant 0 : i32
    %c0_i32_1 = arith.constant 0 : i32
    return %c0_i32, %c0_i32_0 : i32, i32
  }
  func.func @transform_7(%arg0: i32) -> (i32, i32) {
    %c0_i32 = arith.constant 0 : i32
    %c0_i32_0 = arith.constant 0 : i32
    %c0_i32_1 = arith.constant 0 : i32
    return %c0_i32, %c0_i32_0 : i32, i32
  }
  func.func @transform_8(%arg0: i32) -> (i32, i32) {
    %c0_i32 = arith.constant 0 : i32
    %c0_i32_0 = arith.constant 0 : i32
    %c0_i32_1 = arith.constant 0 : i32
    return %c0_i32, %c0_i32_0 : i32, i32
  }
  func.func @transform_9(%arg0: i32) -> (i32, i32) {
    %c0_i32 = arith.constant 0 : i32
    %c0_i32_0 = arith.constant 0 : i32
    %c0_i32_1 = arith.constant 0 : i32
    return %c0_i32, %c0_i32_0 : i32, i32
  }
  func.func @transform_10(%arg0: i32) -> (i32, i32) {
    %c0_i32 = arith.constant 0 : i32
    %c0_i32_0 = arith.constant 0 : i32
    %c0_i32_1 = arith.constant 0 : i32
    return %c0_i32, %c0_i32_0 : i32, i32
  }
  func.func @transform_11(%arg0: i32) -> (i32, i32) {
    %c0_i32 = arith.constant 0 : i32
    %c0_i32_0 = arith.constant 0 : i32
    return %arg0, %c0_i32 : i32, i32
  }
}

</mosaic_0001>

<llo_original>
// kernel: tpu_custom_call.1
$region0: #{tpu_custom_call.1}
  #allocation0 [shape = 'u32[]', space=smem, size = 0x4, offset = 0x4, fixed_abs, tag = 'smem constant byte address 0x4 - core index']
  #allocation1 [shape = 'u32[144,128]{1,0:T(1,128)}', space=vmem, size = 0x12000, scoped, tag = 'internal scratch']
  %s0 = inlined_call_operand.hbm [shape: f32[16,16,64], index: 0, kind: input, shape index: {}]
  %s1 = inlined_call_operand.vmem [shape: f32[64,64], index: 1, kind: input, shape index: {}]
  %s2 = inlined_call_operand.vmem [shape: f32[1,64], index: 2, kind: input, shape index: {}]
  %s3 = inlined_call_operand.vmem [shape: f32[1,64], index: 3, kind: input, shape index: {}]
  %s4 = inlined_call_operand.vmem [shape: f32[64,64], index: 4, kind: input, shape index: {}]
  %s5 = inlined_call_operand.vmem [shape: f32[1,64], index: 5, kind: input, shape index: {}]
  %s6 = inlined_call_operand.vmem [shape: f32[1,64], index: 6, kind: input, shape index: {}]
  %s7 = inlined_call_operand.vmem [shape: f32[1,64], index: 7, kind: input, shape index: {}]
  %s8 = inlined_call_operand.vmem [shape: f32[64,32], index: 8, kind: input, shape index: {}]
  %s9 = inlined_call_operand.vmem [shape: f32[32,4], index: 9, kind: input, shape index: {}]
  %s10 = inlined_call_operand.vmem [shape: f32[1,4], index: 10, kind: input, shape index: {}]
  %s11 = inlined_call_operand.vmem [shape: f32[16,4], index: 11, kind: output, shape index: {}]
  %s12 = sld [smem:[#allocation0]]
  $region81: #{tpu_custom_call.1} parent=0
    _
  %s14 = ssub.s32 1, %s12
  %s15 = scalar_select 0, %s14, %s12
  $region1: #{tpu_custom_call.1} parent=0
    #allocation2 [shape = 'u8[131072]{0}', space=vmem, size = 0x20000, scoped, tag = 'input window, operand 0']
    #allocation3 [shape = 's32[2]{0}', space=sflag, size = 0x8, scoped, tag = 'scoped memory for tpu_custom_call.1']
    %16 = vsyncpa [#allocation3], 0
    %s17 = scalar_lea.sflag [#allocation3], 1
    %18 = vsyncpa %s17, 0
    loop: start=0, step=1, limit=4
    $region2: #{tpu_custom_call.1} parent=1 // loop_pre_header
      _
    $region3: #{tpu_custom_call.1} parent=1 // loop_header
      %s20 = sphi 0, %s24
      %p21 = scmp.ge.s32.totalorder %s20, 4
      %s30 = sphi 0, %s32
      %s33 = sphi 0, %s30
      %s34 = sphi 0, %s33
      %s50 = sphi 0, %s34
      %s54 = sphi 0, %s54
      %s56 = sphi 0, %s54
      %s57 = sphi 0, %s56
      %s71 = sphi 0, %s57
      %s75 = sphi 0, %s75
      %s77 = sphi 0, %s75
      %s78 = sphi 0, %s77
      %s92 = sphi 0, %s78
      %s96 = sphi 0, %s96
      %s98 = sphi 0, %s96
      %s99 = sphi 0, %s98
      %s113 = sphi 0, %s99
      %s117 = sphi 0, %s117
      %s119 = sphi 0, %s117
      %s120 = sphi 0, %s119
      %s134 = sphi 0, %s120
      %s138 = sphi 0, %s138
      %s140 = sphi 0, %s138
      %s141 = sphi 0, %s140
      %s155 = sphi 0, %s141
      %s159 = sphi 0, %s159
      %s161 = sphi 0, %s159
      %s162 = sphi 0, %s161
      %s176 = sphi 0, %s162
      %s180 = sphi 0, %s180
      %s182 = sphi 0, %s180
      %s183 = sphi 0, %s182
      %s197 = sphi 0, %s183
      %s201 = sphi 0, %s201
      %s203 = sphi 0, %s201
      %s204 = sphi 0, %s203
      %s218 = sphi 0, %s204
      %s222 = sphi 0, %s222
      %s224 = sphi 0, %s222
      %s225 = sphi 0, %s224
      %s239 = sphi 0, %s225
      %s243 = sphi 0, %s243
      %s245 = sphi 0, %s243
      %s246 = sphi 0, %s245
      %s260 = sphi 0, %s246
      %s266 = sphi 0, %s268
      %s269 = sphi 0, %s266
      %s270 = sphi 0, %s269
      %s286 = sphi 0, %s270
    $region4: #{tpu_custom_call.1} parent=1 // loop_header_branch
      %23 = sbr.rel (%p21) target = $region8
    $region5: #{tpu_custom_call.1} parent=1 // loop_body
      %s25 = ssub.s32 %s20, 1
      %s26 = ssub.s32 %s20, 2
      %s27 = sadd.s32 %s20, 1
      %s28 = ssub.s32 %s20, %s27
      %p29 = scmp.eq.s32.totalorder %s28, 0
      %s31 = sadd.s32 %s30, 1
      %s32 = scalar_select %p29, %s30, %s31
      %p35 = pneg %p29
      %p36 = scmp.eq.s32.totalorder %s20, 1
      %p37 = por %p35, %p36
      %p38 = scmp.ne.s32.totalorder %s30, %s33
      %p39 = scmp.eq.s32.totalorder %s20, 0
      %p40 = por %p38, %p39
      %p41 = scmp.ne.s32.totalorder %s30, %s33
      %p42 = scmp.eq.s32.totalorder %s25, 1
      %p43 = por %p41, %p42
      %p44 = scmp.ne.s32.totalorder %s33, %s34
      %p45 = scmp.eq.s32.totalorder %s25, 0
      %p46 = por %p44, %p45
      %p47 = scmp.ne.s32.totalorder %s33, %s34
      %p48 = scmp.eq.s32.totalorder %s26, 1
      %p49 = por %p47, %p48
      %p51 = scmp.ne.s32.totalorder %s34, %s50
      %p52 = scmp.eq.s32.totalorder %s26, 0
      %p53 = por %p51, %p52
      %s55 = sadd.s32 %s54, 1
      %p58 = scmp.eq.s32.totalorder %s20, 1
      %p59 = scmp.ne.s32.totalorder %s54, %s56
      %p60 = scmp.eq.s32.totalorder %s20, 0
      %p61 = por %p59, %p60
      %p62 = scmp.ne.s32.totalorder %s54, %s56
      %p63 = scmp.eq.s32.totalorder %s25, 1
      %p64 = por %p62, %p63
      %p65 = scmp.ne.s32.totalorder %s56, %s57
      %p66 = scmp.eq.s32.totalorder %s25, 0
      %p67 = por %p65, %p66
      %p68 = scmp.ne.s32.totalorder %s56, %s57
      %p69 = scmp.eq.s32.totalorder %s26, 1
      %p70 = por %p68, %p69
      %p72 = scmp.ne.s32.totalorder %s57, %s71
      %p73 = scmp.eq.s32.totalorder %s26, 0
      %p74 = por %p72, %p73
      %s76 = sadd.s32 %s75, 1
      %p79 = scmp.eq.s32.totalorder %s20, 1
      %p80 = scmp.ne.s32.totalorder %s75, %s77
      %p81 = scmp.eq.s32.totalorder %s20, 0
      %p82 = por %p80, %p81
      %p83 = scmp.ne.s32.totalorder %s75, %s77
      %p84 = scmp.eq.s32.totalorder %s25, 1
      %p85 = por %p83, %p84
      %p86 = scmp.ne.s32.totalorder %s77, %s78
      %p87 = scmp.eq.s32.totalorder %s25, 0
      %p88 = por %p86, %p87
      %p89 = scmp.ne.s32.totalorder %s77, %s78
      %p90 = scmp.eq.s32.totalorder %s26, 1
      %p91 = por %p89, %p90
      %p93 = scmp.ne.s32.totalorder %s78, %s92
      %p94 = scmp.eq.s32.totalorder %s26, 0
      %p95 = por %p93, %p94
      %s97 = sadd.s32 %s96, 1
      %p100 = scmp.eq.s32.totalorder %s20, 1
      %p101 = scmp.ne.s32.totalorder %s96, %s98
      %p102 = scmp.eq.s32.totalorder %s20, 0
      %p103 = por %p101, %p102
      %p104 = scmp.ne.s32.totalorder %s96, %s98
      %p105 = scmp.eq.s32.totalorder %s25, 1
      %p106 = por %p104, %p105
      %p107 = scmp.ne.s32.totalorder %s98, %s99
      %p108 = scmp.eq.s32.totalorder %s25, 0
      %p109 = por %p107, %p108
      %p110 = scmp.ne.s32.totalorder %s98, %s99
      %p111 = scmp.eq.s32.totalorder %s26, 1
      %p112 = por %p110, %p111
      %p114 = scmp.ne.s32.totalorder %s99, %s113
      %p115 = scmp.eq.s32.totalorder %s26, 0
      %p116 = por %p114, %p115
      %s118 = sadd.s32 %s117, 1
      %p121 = scmp.eq.s32.totalorder %s20, 1
      %p122 = scmp.ne.s32.totalorder %s117, %s119
      %p123 = scmp.eq.s32.totalorder %s20, 0
      %p124 = por %p122, %p123
      %p125 = scmp.ne.s32.totalorder %s117, %s119
      %p126 = scmp.eq.s32.totalorder %s25, 1
      %p127 = por %p125, %p126
      %p128 = scmp.ne.s32.totalorder %s119, %s120
      %p129 = scmp.eq.s32.totalorder %s25, 0
      %p130 = por %p128, %p129
      %p131 = scmp.ne.s32.totalorder %s119, %s120
      %p132 = scmp.eq.s32.totalorder %s26, 1
      %p133 = por %p131, %p132
      %p135 = scmp.ne.s32.totalorder %s120, %s134
      %p136 = scmp.eq.s32.totalorder %s26, 0
      %p137 = por %p135, %p136
      %s139 = sadd.s32 %s138, 1
      %p142 = scmp.eq.s32.totalorder %s20, 1
      %p143 = scmp.ne.s32.totalorder %s138, %s140
      %p144 = scmp.eq.s32.totalorder %s20, 0
      %p145 = por %p143, %p144
      %p146 = scmp.ne.s32.totalorder %s138, %s140
      %p147 = scmp.eq.s32.totalorder %s25, 1
      %p148 = por %p146, %p147
      %p149 = scmp.ne.s32.totalorder %s140, %s141
      %p150 = scmp.eq.s32.totalorder %s25, 0
      %p151 = por %p149, %p150
      %p152 = scmp.ne.s32.totalorder %s140, %s141
      %p153 = scmp.eq.s32.totalorder %s26, 1
      %p154 = por %p152, %p153
      %p156 = scmp.ne.s32.totalorder %s141, %s155
      %p157 = scmp.eq.s32.totalorder %s26, 0
      %p158 = por %p156, %p157
      %s160 = sadd.s32 %s159, 1
      %p163 = scmp.eq.s32.totalorder %s20, 1
      %p164 = scmp.ne.s32.totalorder %s159, %s161
      %p165 = scmp.eq.s32.totalorder %s20, 0
      %p166 = por %p164, %p165
      %p167 = scmp.ne.s32.totalorder %s159, %s161
      %p168 = scmp.eq.s32.totalorder %s25, 1
      %p169 = por %p167, %p168
      %p170 = scmp.ne.s32.totalorder %s161, %s162
      %p171 = scmp.eq.s32.totalorder %s25, 0
      %p172 = por %p170, %p171
      %p173 = scmp.ne.s32.totalorder %s161, %s162
      %p174 = scmp.eq.s32.totalorder %s26, 1
      %p175 = por %p173, %p174
      %p177 = scmp.ne.s32.totalorder %s162, %s176
      %p178 = scmp.eq.s32.totalorder %s26, 0
      %p179 = por %p177, %p178
      %s181 = sadd.s32 %s180, 1
      %p184 = scmp.eq.s32.totalorder %s20, 1
      %p185 = scmp.ne.s32.totalorder %s180, %s182
      %p186 = scmp.eq.s32.totalorder %s20, 0
      %p187 = por %p185, %p186
      %p188 = scmp.ne.s32.totalorder %s180, %s182
      %p189 = scmp.eq.s32.totalorder %s25, 1
      %p190 = por %p188, %p189
      %p191 = scmp.ne.s32.totalorder %s182, %s183
      %p192 = scmp.eq.s32.totalorder %s25, 0
      %p193 = por %p191, %p192
      %p194 = scmp.ne.s32.totalorder %s182, %s183
      %p195 = scmp.eq.s32.totalorder %s26, 1
      %p196 = por %p194, %p195
      %p198 = scmp.ne.s32.totalorder %s183, %s197
      %p199 = scmp.eq.s32.totalorder %s26, 0
      %p200 = por %p198, %p199
      %s202 = sadd.s32 %s201, 1
      %p205 = scmp.eq.s32.totalorder %s20, 1
      %p206 = scmp.ne.s32.totalorder %s201, %s203
      %p207 = scmp.eq.s32.totalorder %s20, 0
      %p208 = por %p206, %p207
      %p209 = scmp.ne.s32.totalorder %s201, %s203
      %p210 = scmp.eq.s32.totalorder %s25, 1
      %p211 = por %p209, %p210
      %p212 = scmp.ne.s32.totalorder %s203, %s204
      %p213 = scmp.eq.s32.totalorder %s25, 0
      %p214 = por %p212, %p213
      %p215 = scmp.ne.s32.totalorder %s203, %s204
      %p216 = scmp.eq.s32.totalorder %s26, 1
      %p217 = por %p215, %p216
      %p219 = scmp.ne.s32.totalorder %s204, %s218
      %p220 = scmp.eq.s32.totalorder %s26, 0
      %p221 = por %p219, %p220
      %s223 = sadd.s32 %s222, 1
      %p226 = scmp.eq.s32.totalorder %s20, 1
      %p227 = scmp.ne.s32.totalorder %s222, %s224
      %p228 = scmp.eq.s32.totalorder %s20, 0
      %p229 = por %p227, %p228
      %p230 = scmp.ne.s32.totalorder %s222, %s224
      %p231 = scmp.eq.s32.totalorder %s25, 1
      %p232 = por %p230, %p231
      %p233 = scmp.ne.s32.totalorder %s224, %s225
      %p234 = scmp.eq.s32.totalorder %s25, 0
      %p235 = por %p233, %p234
      %p236 = scmp.ne.s32.totalorder %s224, %s225
      %p237 = scmp.eq.s32.totalorder %s26, 1
      %p238 = por %p236, %p237
      %p240 = scmp.ne.s32.totalorder %s225, %s239
      %p241 = scmp.eq.s32.totalorder %s26, 0
      %p242 = por %p240, %p241
      %s244 = sadd.s32 %s243, 1
      %p247 = scmp.eq.s32.totalorder %s20, 1
      %p248 = scmp.ne.s32.totalorder %s243, %s245
      %p249 = scmp.eq.s32.totalorder %s20, 0
      %p250 = por %p248, %p249
      %p251 = scmp.ne.s32.totalorder %s243, %s245
      %p252 = scmp.eq.s32.totalorder %s25, 1
      %p253 = por %p251, %p252
      %p254 = scmp.ne.s32.totalorder %s245, %s246
      %p255 = scmp.eq.s32.totalorder %s25, 0
      %p256 = por %p254, %p255
      %p257 = scmp.ne.s32.totalorder %s245, %s246
      %p258 = scmp.eq.s32.totalorder %s26, 1
      %p259 = por %p257, %p258
      %p261 = scmp.ne.s32.totalorder %s246, %s260
      %p262 = scmp.eq.s32.totalorder %s26, 0
      %p263 = por %p261, %p262
      %s264 = ssub.s32 %s20, %s27
      %p265 = scmp.eq.s32.totalorder %s264, 0
      %s267 = sadd.s32 %s266, 1
      %s268 = scalar_select %p265, %s266, %s267
      %p271 = pneg %p265
      %p272 = scmp.eq.s32.totalorder %s20, 1
      %p273 = por %p271, %p272
      %p274 = scmp.ne.s32.totalorder %s266, %s269
      %p275 = scmp.eq.s32.totalorder %s20, 0
      %p276 = por %p274, %p275
      %p277 = scmp.ne.s32.totalorder %s266, %s269
      %p278 = scmp.eq.s32.totalorder %s25, 1
      %p279 = por %p277, %p278
      %p280 = scmp.ne.s32.totalorder %s269, %s270
      %p281 = scmp.eq.s32.totalorder %s25, 0
      %p282 = por %p280, %p281
      %p283 = scmp.ne.s32.totalorder %s269, %s270
      %p284 = scmp.eq.s32.totalorder %s26, 1
      %p285 = por %p283, %p284
      %p287 = scmp.ne.s32.totalorder %s270, %s286
      %p288 = scmp.eq.s32.totalorder %s26, 0
      %p289 = por %p287, %p288
      %p290 = scmp.le.s32.totalorder 1, %s20
      %p291 = scmp.lt.s32.totalorder %s20, 3
      %p292 = pnand %p290, %p291
      %p293 = pneg %p292
      // Predicated region
      $region9: #{tpu_custom_call.1} parent=5 // pred_check
        _
      $region10: #{tpu_custom_call.1} parent=5 // pred_check_branch
        %295 = sbr.rel (%p292) target = $region12
      $region11: #{tpu_custom_call.1} parent=5 // pred_region
        %s296 = ssub.s32 %s20, 1
        // Predicated region
        $region13: #{tpu_custom_call.1} parent=11 // pred_check
          %p297 = pneg %p67
        $region14: #{tpu_custom_call.1} parent=11 // pred_check_branch
          %299 = sbr.rel (%p297) target = $region16
        $region15: #{tpu_custom_call.1} parent=11 // pred_region
          _
        $region16: #{tpu_custom_call.1} parent=11 // pred_fallthru
          _
        // Predicated region
        $region17: #{tpu_custom_call.1} parent=11 // pred_check
          %p300 = pneg %p88
        $region18: #{tpu_custom_call.1} parent=11 // pred_check_branch
          %302 = sbr.rel (%p300) target = $region20
        $region19: #{tpu_custom_call.1} parent=11 // pred_region
          _
        $region20: #{tpu_custom_call.1} parent=11 // pred_fallthru
          _
        // Predicated region
        $region21: #{tpu_custom_call.1} parent=11 // pred_check
          %p303 = pneg %p109
        $region22: #{tpu_custom_call.1} parent=11 // pred_check_branch
          %305 = sbr.rel (%p303) target = $region24
        $region23: #{tpu_custom_call.1} parent=11 // pred_region
          _
        $region24: #{tpu_custom_call.1} parent=11 // pred_fallthru
          _
        // Predicated region
        $region25: #{tpu_custom_call.1} parent=11 // pred_check
          %p306 = pneg %p130
        $region26: #{tpu_custom_call.1} parent=11 // pred_check_branch
          %308 = sbr.rel (%p306) target = $region28
        $region27: #{tpu_custom_call.1} parent=11 // pred_region
          _
        $region28: #{tpu_custom_call.1} parent=11 // pred_fallthru
          _
        // Predicated region
        $region29: #{tpu_custom_call.1} parent=11 // pred_check
          %p309 = pneg %p151
        $region30: #{tpu_custom_call.1} parent=11 // pred_check_branch
          %311 = sbr.rel (%p309) target = $region32
        $region31: #{tpu_custom_call.1} parent=11 // pred_region
          _
        $region32: #{tpu_custom_call.1} parent=11 // pred_fallthru
          _
        // Predicated region
        $region33: #{tpu_custom_call.1} parent=11 // pred_check
          %p312 = pneg %p172
        $region34: #{tpu_custom_call.1} parent=11 // pred_check_branch
          %314 = sbr.rel (%p312) target = $region36
        $region35: #{tpu_custom_call.1} parent=11 // pred_region
          _
        $region36: #{tpu_custom_call.1} parent=11 // pred_fallthru
          _
        // Predicated region
        $region37: #{tpu_custom_call.1} parent=11 // pred_check
          %p315 = pneg %p193
        $region38: #{tpu_custom_call.1} parent=11 // pred_check_branch
          %317 = sbr.rel (%p315) target = $region40
        $region39: #{tpu_custom_call.1} parent=11 // pred_region
          _
        $region40: #{tpu_custom_call.1} parent=11 // pred_fallthru
          _
        // Predicated region
        $region41: #{tpu_custom_call.1} parent=11 // pred_check
          %p318 = pneg %p214
        $region42: #{tpu_custom_call.1} parent=11 // pred_check_branch
          %320 = sbr.rel (%p318) target = $region44
        $region43: #{tpu_custom_call.1} parent=11 // pred_region
          _
        $region44: #{tpu_custom_call.1} parent=11 // pred_fallthru
          _
        // Predicated region
        $region45: #{tpu_custom_call.1} parent=11 // pred_check
          %p321 = pneg %p235
        $region46: #{tpu_custom_call.1} parent=11 // pred_check_branch
          %323 = sbr.rel (%p321) target = $region48
        $region47: #{tpu_custom_call.1} parent=11 // pred_region
          _
        $region48: #{tpu_custom_call.1} parent=11 // pred_fallthru
          _
        // Predicated region
        $region49: #{tpu_custom_call.1} parent=11 // pred_check
          %p324 = pneg %p256
        $region50: #{tpu_custom_call.1} parent=11 // pred_check_branch
          %326 = sbr.rel (%p324) target = $region52
        $region51: #{tpu_custom_call.1} parent=11 // pred_region
          _
        $region52: #{tpu_custom_call.1} parent=11 // pred_fallthru
          _
      $region12: #{tpu_custom_call.1} parent=5 // pred_fallthru
        _
      %p327 = scmp.lt.s32.totalorder %s20, 2
      // Predicated region
      $region53: #{tpu_custom_call.1} parent=5 // pred_check
        %p328 = pneg %p327
      $region54: #{tpu_custom_call.1} parent=5 // pred_check_branch
        %330 = sbr.rel (%p328) target = $region56
      $region55: #{tpu_custom_call.1} parent=5 // pred_region
        // Predicated region
        $region57: #{tpu_custom_call.1} parent=55 // pred_check
          %p331 = pneg %p40
        $region58: #{tpu_custom_call.1} parent=55 // pred_check_branch
          %333 = sbr.rel (%p331) target = $region60
        $region59: #{tpu_custom_call.1} parent=55 // pred_region
          %s334 = sand.u32 %s30, 1
          %s335 = scalar_lea.sflag [#allocation3], %s334
          %s336 = sand.u32 %s30, 1
          %s337 = smul.addr %s336, 128
          %s338 = scalar_lea.vmem [#allocation2], %s337
          %s339 = smul.u32 8, %s20
          %s341 = ssub.s32 2048, 2048
          %342 = vsyncadd %s335, %s341
          %s343 = smul.addr %s339, 2
          %s344 = smul.addr %s343, 128
          %s345 = scalar_lea.hbm %s0, %s344
          %s346 = sshll.u32 %s338, 4
          %s347 = int_to_ptr.vmem [resolvable:$true] %s346
          %352 = dma.hbm_to_vmem [thread:$0]  %s345, 2048, %s347, %s335, 128, 128, 8
        $region60: #{tpu_custom_call.1} parent=55 // pred_fallthru
          _
      $region56: #{tpu_custom_call.1} parent=5 // pred_fallthru
        _
      %p353 = scmp.le.s32.totalorder 1, %s20
      %p354 = scmp.lt.s32.totalorder %s20, 3
      %p355 = pnand %p353, %p354
      %p356 = pneg %p355
      // Predicated region
      $region61: #{tpu_custom_call.1} parent=5 // pred_check
        _
      $region62: #{tpu_custom_call.1} parent=5 // pred_check_branch
        %358 = sbr.rel (%p355) target = $region64
      $region63: #{tpu_custom_call.1} parent=5 // pred_region
        %s359 = ssub.s32 %s20, 1
        %s360 = sand.u32 %s33, 1
        %s361 = scalar_lea.sflag [#allocation3], %s360
        %s362 = sand.u32 %s33, 1
        %s363 = smul.addr %s362, 128
        %s364 = scalar_lea.vmem [#allocation2], %s363
        // Predicated region
        $region65: #{tpu_custom_call.1} parent=63 // pred_check
          %p365 = pneg %p46
        $region66: #{tpu_custom_call.1} parent=63 // pred_check_branch
          %367 = sbr.rel (%p365) target = $region68
        $region67: #{tpu_custom_call.1} parent=63 // pred_region
          %368 = dma.done %s361, 2048
        $region68: #{tpu_custom_call.1} parent=63 // pred_fallthru
          _
        %s369 = sand.u32 %s33, 1
        %s370 = scalar_lea.sflag [#allocation3], %s369
        %s371 = sand.u32 %s33, 1
        %s372 = smul.addr %s371, 128
        %s373 = scalar_lea.vmem [#allocation2], %s372
        %p374 = pneg %p46
        %p375 = pneg %p43
        %p376 = pneg %p67
        %p377 = pneg %p64
        %p378 = pneg %p88
        %p379 = pneg %p85
        %p380 = pneg %p109
        %p381 = pneg %p106
        %p382 = pneg %p130
        %p383 = pneg %p127
        %p384 = pneg %p151
        %p385 = pneg %p148
        %p386 = pneg %p172
        %p387 = pneg %p169
        %p388 = pneg %p193
        %p389 = pneg %p190
        %p390 = pneg %p214
        %p391 = pneg %p211
        %p392 = pneg %p235
        %p393 = pneg %p232
        %p394 = pneg %p256
        %p395 = pneg %p253
        %p396 = pneg %p282
        %p397 = pneg %p279
        %p398 = scmp.lt.s32.totalorder %s25, 1
        %s399 = scalar_select %p398, %s25, 1
        %s400 = smul.addr %s399, 8
        %s401 = scalar_lea.vmem %s11, %s400
        %s402 = smul.u32 8, %s25
        %p403 = scmp.lt.s32.totalorder %s25, 1
        %s404 = scalar_select %p403, %s25, 1
        %s405 = smul.addr %s404, 8
        %s406 = scalar_lea.vmem %s11, %s405
        %v407 = vld [vmem:[%s364] sm:$0xff]
        %v408 = vld [vmem:[%s364 + $0x8] sm:$0xff]
        %v409 = vld [vmem:[%s364 + $0x10] sm:$0xff]
        %v410 = vld [vmem:[%s364 + $0x18] sm:$0xff]
        %v411 = vld [vmem:[%s364 + $0x20] sm:$0xff]
        %v412 = vld [vmem:[%s364 + $0x28] sm:$0xff]
        %v413 = vld [vmem:[%s364 + $0x30] sm:$0xff]
        %v414 = vld [vmem:[%s364 + $0x38] sm:$0xff]
        %v415 = vld [vmem:[%s364 + $0x40] sm:$0xff]
        %v416 = vld [vmem:[%s364 + $0x48] sm:$0xff]
        %v417 = vld [vmem:[%s364 + $0x50] sm:$0xff]
        %v418 = vld [vmem:[%s364 + $0x58] sm:$0xff]
        %v419 = vld [vmem:[%s364 + $0x60] sm:$0xff]
        %v420 = vld [vmem:[%s364 + $0x68] sm:$0xff]
        %v421 = vld [vmem:[%s364 + $0x70] sm:$0xff]
        %v422 = vld [vmem:[%s364 + $0x78] sm:$0xff]
        %v423 = vand.u32 2147483647, %v407
        %v424 = vand.u32 2147483647, %v408
        %v425 = vand.u32 2147483647, %v409
        %v426 = vand.u32 2147483647, %v410
        %v427 = vand.u32 2147483647, %v411
        %v428 = vand.u32 2147483647, %v412
        %v429 = vand.u32 2147483647, %v413
        %v430 = vand.u32 2147483647, %v414
        %v431 = vand.u32 2147483647, %v415
        %v432 = vand.u32 2147483647, %v416
        %v433 = vand.u32 2147483647, %v417
        %v434 = vand.u32 2147483647, %v418
        %v435 = vand.u32 2147483647, %v419
        %v436 = vand.u32 2147483647, %v420
        %v437 = vand.u32 2147483647, %v421
        %v438 = vand.u32 2147483647, %v422
        %vm439 = vcmask 523264
        %v440 = vsel %vm439, %v423, 0.0
        %441 = vadd.xlane.f32.xlu0 %v440
        %v442 = vpop.xlane.xlu0 %441
        %v443 = vsel %vm439, %v424, 0.0
        %444 = vadd.xlane.f32.xlu0 %v443
        %v445 = vpop.xlane.xlu0 %444
        %v446 = vsel %vm439, %v425, 0.0
        %447 = vadd.xlane.f32.xlu0 %v446
        %v448 = vpop.xlane.xlu0 %447
        %v449 = vsel %vm439, %v426, 0.0
        %450 = vadd.xlane.f32.xlu0 %v449
        %v451 = vpop.xlane.xlu0 %450
        %v452 = vsel %vm439, %v427, 0.0
        %453 = vadd.xlane.f32.xlu0 %v452
        %v454 = vpop.xlane.xlu0 %453
        %v455 = vsel %vm439, %v428, 0.0
        %456 = vadd.xlane.f32.xlu0 %v455
        %v457 = vpop.xlane.xlu0 %456
        %v458 = vsel %vm439, %v429, 0.0
        %459 = vadd.xlane.f32.xlu0 %v458
        %v460 = vpop.xlane.xlu0 %459
        %v461 = vsel %vm439, %v430, 0.0
        %462 = vadd.xlane.f32.xlu0 %v461
        %v463 = vpop.xlane.xlu0 %462
        %v464 = vsel %vm439, %v431, 0.0
        %465 = vadd.xlane.f32.xlu0 %v464
        %v466 = vpop.xlane.xlu0 %465
        %v467 = vsel %vm439, %v432, 0.0
        %468 = vadd.xlane.f32.xlu0 %v467
        %v469 = vpop.xlane.xlu0 %468
        %v470 = vsel %vm439, %v433, 0.0
        %471 = vadd.xlane.f32.xlu0 %v470
        %v472 = vpop.xlane.xlu0 %471
        %v473 = vsel %vm439, %v434, 0.0
        %474 = vadd.xlane.f32.xlu0 %v473
        %v475 = vpop.xlane.xlu0 %474
        %v476 = vsel %vm439, %v435, 0.0
        %477 = vadd.xlane.f32.xlu0 %v476
        %v478 = vpop.xlane.xlu0 %477
        %v479 = vsel %vm439, %v436, 0.0
        %480 = vadd.xlane.f32.xlu0 %v479
        %v481 = vpop.xlane.xlu0 %480
        %v482 = vsel %vm439, %v437, 0.0
        %483 = vadd.xlane.f32.xlu0 %v482
        %v484 = vpop.xlane.xlu0 %483
        %v485 = vsel %vm439, %v438, 0.0
        %486 = vadd.xlane.f32.xlu0 %v485
        %v487 = vpop.xlane.xlu0 %486
        %vm488 = vcmp.eq.f32.partialorder %v442, 0.0
        %vm489 = vcmp.eq.f32.partialorder %v445, 0.0
        %vm490 = vcmp.eq.f32.partialorder %v448, 0.0
        %vm491 = vcmp.eq.f32.partialorder %v451, 0.0
        %vm492 = vcmp.eq.f32.partialorder %v454, 0.0
        %vm493 = vcmp.eq.f32.partialorder %v457, 0.0
        %vm494 = vcmp.eq.f32.partialorder %v460, 0.0
        %vm495 = vcmp.eq.f32.partialorder %v463, 0.0
        %vm496 = vcmp.eq.f32.partialorder %v466, 0.0
        %vm497 = vcmp.eq.f32.partialorder %v469, 0.0
        %vm498 = vcmp.eq.f32.partialorder %v472, 0.0
        %vm499 = vcmp.eq.f32.partialorder %v475, 0.0
        %vm500 = vcmp.eq.f32.partialorder %v478, 0.0
        %vm501 = vcmp.eq.f32.partialorder %v481, 0.0
        %vm502 = vcmp.eq.f32.partialorder %v484, 0.0
        %vm503 = vcmp.eq.f32.partialorder %v487, 0.0
        %v504 = vld [vmem:[%s1] sm:$0xff]
        %v505 = vld [vmem:[%s1 + $0x8] sm:$0xff]
        %v506 = vld [vmem:[%s1 + $0x10] sm:$0xff]
        %v507 = vld [vmem:[%s1 + $0x18] sm:$0xff]
        %v508 = vld [vmem:[%s1 + $0x20] sm:$0xff]
        %v509 = vld [vmem:[%s1 + $0x28] sm:$0xff]
        %v510 = vld [vmem:[%s1 + $0x30] sm:$0xff]
        %v511 = vld [vmem:[%s1 + $0x38] sm:$0xff]
        %v512 = vld [vmem:[%s2] sm:$0x1]
        %v514 = vlaneseq
        %v515 = vshrl.u32 %v514, 7
        %v516 = vsub.s32 0, %v515
        %v517 = vrot.slane %v512, %v516
        %v520 = vsel %vm439, %v407, 0
        %v523 = vsel %vm439, %v408, 0
        %v526 = vsel %vm439, %v409, 0
        %v529 = vsel %vm439, %v410, 0
        %v532 = vsel %vm439, %v411, 0
        %v535 = vsel %vm439, %v412, 0
        %v538 = vsel %vm439, %v413, 0
        %v541 = vsel %vm439, %v414, 0
        %v544 = vsel %vm439, %v415, 0
        %v547 = vsel %vm439, %v416, 0
        %v550 = vsel %vm439, %v417, 0
        %v553 = vsel %vm439, %v418, 0
        %v556 = vsel %vm439, %v419, 0
        %v559 = vsel %vm439, %v420, 0
        %v562 = vsel %vm439, %v421, 0
        %v565 = vsel %vm439, %v422, 0
        %567 = vmatprep.subr.mxu0 0.0
        %568 = vmatpush1.msra.mxu0 0.0
        %569 = vmatprep.subr.mxu0 0.0
        %570 = vmatpush1.msra.mxu0 0.0
        %571 = vmatprep.subr.mxu0 0.0
        %572 = vmatpush1.msra.mxu0 0.0
        %573 = vmatprep.subr.mxu0 0.0
        %574 = vmatpush1.msra.mxu0 0.0
        %575 = vmatprep.subr.mxu0 0.0
        %576 = vmatpush1.msra.mxu0 0.0
        %577 = vmatprep.subr.mxu0 0.0
        %578 = vmatpush1.msra.mxu0 0.0
        %579 = vmatprep.subr.mxu0 0.0
        %580 = vmatpush1.msra.mxu0 0.0
        %581 = vmatprep.subr.mxu0 0.0
        %582 = vmatpush1.msra.mxu0 0.0
        %583 = vmatprep.subr.mxu0 0.0
        %584 = vmatpush1.msra.mxu0 %v511
        %585 = vmatprep.subr.mxu0 0.0
        %586 = vmatpush1.msra.mxu0 %v510
        %587 = vmatprep.subr.mxu0 0.0
        %588 = vmatpush1.msra.mxu0 %v509
        %589 = vmatprep.subr.mxu0 0.0
        %590 = vmatpush1.msra.mxu0 %v508
        %591 = vmatprep.subr.mxu0 0.0
        %592 = vmatpush1.msra.mxu0 %v507
        %593 = vmatprep.subr.mxu0 0.0
        %594 = vmatpush1.msra.mxu0 %v506
        %595 = vmatprep.subr.mxu0 0.0
        %596 = vmatpush1.msra.mxu0 %v505
        %597 = vmatprep.subr.mxu0 0.0
        %598 = vmatpush1.msra.mxu0 %v504
        %599 = vmatprep.subr.mxu0 0.0
        %600 = vmatpush2.msra.mxu0 0.0
        %601 = vmatprep.subr.mxu0 0.0
        %602 = vmatpush2.msra.mxu0 0.0
        %603 = vmatprep.subr.mxu0 0.0
        %604 = vmatpush2.msra.mxu0 0.0
        %605 = vmatprep.subr.mxu0 0.0
        %606 = vmatpush2.msra.mxu0 0.0
        %607 = vmatprep.subr.mxu0 0.0
        %608 = vmatpush2.msra.mxu0 0.0
        %609 = vmatprep.subr.mxu0 0.0
        %610 = vmatpush2.msra.mxu0 0.0
        %611 = vmatprep.subr.mxu0 0.0
        %612 = vmatpush2.msra.mxu0 0.0
        %613 = vmatprep.subr.mxu0 0.0
        %614 = vmatpush2.msra.mxu0 0.0
        %615 = vmatprep.subr.mxu0 0.0
        %616 = vmatpush2.msra.mxu0 0.0
        %617 = vmatprep.subr.mxu0 0.0
        %618 = vmatpush2.msra.mxu0 0.0
        %619 = vmatprep.subr.mxu0 0.0
        %620 = vmatpush2.msra.mxu0 0.0
        %621 = vmatprep.subr.mxu0 0.0
        %622 = vmatpush2.msra.mxu0 0.0
        %623 = vmatprep.subr.mxu0 0.0
        %624 = vmatpush2.msra.mxu0 0.0
        %625 = vmatprep.subr.mxu0 0.0
        %626 = vmatpush2.msra.mxu0 0.0
        %627 = vmatprep.subr.mxu0 0.0
        %628 = vmatpush2.msra.mxu0 0.0
        %629 = vmatprep.subr.mxu0 0.0
        %630 = vmatpush2.msra.mxu0 0.0
        %631 = vmatprep.mubr.f32.mxu0 0.0
        %632 = vmatmul.mubr.f32.gmra.mxu0 %v520
        %v633 = vpop.f32.mrf.mxu0
        %v634 = vadd.f32 %v517, %v633
        %v635 = vpop.f32.mrf.mxu0
        %636 = vmatprep.mubr.f32.mxu0 0.0
        %637 = vmatmul.mubr.f32.gmra.mxu0 %v523
        %v638 = vpop.f32.mrf.mxu0
        %v639 = vadd.f32 %v517, %v638
        %v640 = vpop.f32.mrf.mxu0
        %641 = vmatprep.mubr.f32.mxu0 0.0
        %642 = vmatmul.mubr.f32.gmra.mxu0 %v526
        %v643 = vpop.f32.mrf.mxu0
        %v644 = vadd.f32 %v517, %v643
        %v645 = vpop.f32.mrf.mxu0
        %646 = vmatprep.mubr.f32.mxu0 0.0
        %647 = vmatmul.mubr.f32.gmra.mxu0 %v529
        %v648 = vpop.f32.mrf.mxu0
        %v649 = vadd.f32 %v517, %v648
        %v650 = vpop.f32.mrf.mxu0
        %651 = vmatprep.mubr.f32.mxu0 0.0
        %652 = vmatmul.mubr.f32.gmra.mxu0 %v532
        %v653 = vpop.f32.mrf.mxu0
        %v654 = vadd.f32 %v517, %v653
        %v655 = vpop.f32.mrf.mxu0
        %656 = vmatprep.mubr.f32.mxu0 0.0
        %657 = vmatmul.mubr.f32.gmra.mxu0 %v535
        %v658 = vpop.f32.mrf.mxu0
        %v659 = vadd.f32 %v517, %v658
        %v660 = vpop.f32.mrf.mxu0
        %661 = vmatprep.mubr.f32.mxu0 0.0
        %662 = vmatmul.mubr.f32.gmra.mxu0 %v538
        %v663 = vpop.f32.mrf.mxu0
        %v664 = vadd.f32 %v517, %v663
        %v665 = vpop.f32.mrf.mxu0
        %666 = vmatprep.mubr.f32.mxu0 0.0
        %667 = vmatmul.mubr.f32.gmra.mxu0 %v541
        %v668 = vpop.f32.mrf.mxu0
        %v669 = vadd.f32 %v517, %v668
        %v670 = vpop.f32.mrf.mxu0
        %671 = vmatprep.mubr.f32.mxu0 0.0
        %672 = vmatmul.mubr.f32.gmra.mxu0 %v544
        %v673 = vpop.f32.mrf.mxu0
        %v674 = vadd.f32 %v517, %v673
        %v675 = vpop.f32.mrf.mxu0
        %676 = vmatprep.mubr.f32.mxu0 0.0
        %677 = vmatmul.mubr.f32.gmra.mxu0 %v547
        %v678 = vpop.f32.mrf.mxu0
        %v679 = vadd.f32 %v517, %v678
        %v680 = vpop.f32.mrf.mxu0
        %681 = vmatprep.mubr.f32.mxu0 0.0
        %682 = vmatmul.mubr.f32.gmra.mxu0 %v550
        %v683 = vpop.f32.mrf.mxu0
        %v684 = vadd.f32 %v517, %v683
        %v685 = vpop.f32.mrf.mxu0
        %686 = vmatprep.mubr.f32.mxu0 0.0
        %687 = vmatmul.mubr.f32.gmra.mxu0 %v553
        %v688 = vpop.f32.mrf.mxu0
        %v689 = vadd.f32 %v517, %v688
        %v690 = vpop.f32.mrf.mxu0
        %691 = vmatprep.mubr.f32.mxu0 0.0
        %692 = vmatmul.mubr.f32.gmra.mxu0 %v556
        %v693 = vpop.f32.mrf.mxu0
        %v694 = vadd.f32 %v517, %v693
        %v695 = vpop.f32.mrf.mxu0
        %696 = vmatprep.mubr.f32.mxu0 0.0
        %697 = vmatmul.mubr.f32.gmra.mxu0 %v559
        %v698 = vpop.f32.mrf.mxu0
        %v699 = vadd.f32 %v517, %v698
        %v700 = vpop.f32.mrf.mxu0
        %701 = vmatprep.mubr.f32.mxu0 0.0
        %702 = vmatmul.mubr.f32.gmra.mxu0 %v562
        %v703 = vpop.f32.mrf.mxu0
        %v704 = vadd.f32 %v517, %v703
        %v705 = vpop.f32.mrf.mxu0
        %706 = vmatprep.mubr.f32.mxu0 0.0
        %707 = vmatmul.mubr.f32.gmra.mxu0 %v565
        %v708 = vpop.f32.mrf.mxu0
        %v709 = vadd.f32 %v517, %v708
        %v710 = vpop.f32.mrf.mxu0
        %711 = vdwg.mxu0
        %v712 = vmax.f32 %v634, 0.0
        %v713 = vmax.f32 %v639, 0.0
        %v714 = vmax.f32 %v644, 0.0
        %v715 = vmax.f32 %v649, 0.0
        %v716 = vmax.f32 %v654, 0.0
        %v717 = vmax.f32 %v659, 0.0
        %v718 = vmax.f32 %v664, 0.0
        %v719 = vmax.f32 %v669, 0.0
        %v720 = vmax.f32 %v674, 0.0
        %v721 = vmax.f32 %v679, 0.0
        %v722 = vmax.f32 %v684, 0.0
        %v723 = vmax.f32 %v689, 0.0
        %v724 = vmax.f32 %v694, 0.0
        %v725 = vmax.f32 %v699, 0.0
        %v726 = vmax.f32 %v704, 0.0
        %v727 = vmax.f32 %v709, 0.0
        %v728 = vld [vmem:[%s3] sm:$0x1]
        %v730 = vlaneseq
        %v731 = vshrl.u32 %v730, 7
        %v732 = vsub.s32 0, %v731
        %v733 = vrot.slane %v728, %v732
        %v735 = vmul.f32 %v712, %v733
        %v736 = vmul.f32 %v713, %v733
        %v737 = vmul.f32 %v714, %v733
        %v738 = vmul.f32 %v715, %v733
        %v739 = vmul.f32 %v716, %v733
        %v740 = vmul.f32 %v717, %v733
        %v741 = vmul.f32 %v718, %v733
        %v742 = vmul.f32 %v719, %v733
        %v743 = vmul.f32 %v720, %v733
        %v744 = vmul.f32 %v721, %v733
        %v745 = vmul.f32 %v722, %v733
        %v746 = vmul.f32 %v723, %v733
        %v747 = vmul.f32 %v724, %v733
        %v748 = vmul.f32 %v725, %v733
        %v749 = vmul.f32 %v726, %v733
        %v750 = vmul.f32 %v727, %v733
        %v751 = vsel %vm439, %v735, 0.0
        %752 = vadd.xlane.f32.xlu0 %v751
        %v753 = vpop.xlane.xlu0 %752
        %v754 = vsel %vm439, %v736, 0.0
        %755 = vadd.xlane.f32.xlu0 %v754
        %v756 = vpop.xlane.xlu0 %755
        %v757 = vsel %vm439, %v737, 0.0
        %758 = vadd.xlane.f32.xlu0 %v757
        %v759 = vpop.xlane.xlu0 %758
        %v760 = vsel %vm439, %v738, 0.0
        %761 = vadd.xlane.f32.xlu0 %v760
        %v762 = vpop.xlane.xlu0 %761
        %v763 = vsel %vm439, %v739, 0.0
        %764 = vadd.xlane.f32.xlu0 %v763
        %v765 = vpop.xlane.xlu0 %764
        %v766 = vsel %vm439, %v740, 0.0
        %767 = vadd.xlane.f32.xlu0 %v766
        %v768 = vpop.xlane.xlu0 %767
        %v769 = vsel %vm439, %v741, 0.0
        %770 = vadd.xlane.f32.xlu0 %v769
        %v771 = vpop.xlane.xlu0 %770
        %v772 = vsel %vm439, %v742, 0.0
        %773 = vadd.xlane.f32.xlu0 %v772
        %v774 = vpop.xlane.xlu0 %773
        %v775 = vsel %vm439, %v743, 0.0
        %776 = vadd.xlane.f32.xlu0 %v775
        %v777 = vpop.xlane.xlu0 %776
        %v778 = vsel %vm439, %v744, 0.0
        %779 = vadd.xlane.f32.xlu0 %v778
        %v780 = vpop.xlane.xlu0 %779
        %v781 = vsel %vm439, %v745, 0.0
        %782 = vadd.xlane.f32.xlu0 %v781
        %v783 = vpop.xlane.xlu0 %782
        %v784 = vsel %vm439, %v746, 0.0
        %785 = vadd.xlane.f32.xlu0 %v784
        %v786 = vpop.xlane.xlu0 %785
        %v787 = vsel %vm439, %v747, 0.0
        %788 = vadd.xlane.f32.xlu0 %v787
        %v789 = vpop.xlane.xlu0 %788
        %v790 = vsel %vm439, %v748, 0.0
        %791 = vadd.xlane.f32.xlu0 %v790
        %v792 = vpop.xlane.xlu0 %791
        %v793 = vsel %vm439, %v749, 0.0
        %794 = vadd.xlane.f32.xlu0 %v793
        %v795 = vpop.xlane.xlu0 %794
        %v796 = vsel %vm439, %v750, 0.0
        %797 = vadd.xlane.f32.xlu0 %v796
        %v798 = vpop.xlane.xlu0 %797
        %v799 = vsel %vm488, -1e+09, %v753
        %v800 = vsel %vm489, -1e+09, %v756
        %v801 = vsel %vm490, -1e+09, %v759
        %v802 = vsel %vm491, -1e+09, %v762
        %v803 = vsel %vm492, -1e+09, %v765
        %v804 = vsel %vm493, -1e+09, %v768
        %v805 = vsel %vm494, -1e+09, %v771
        %v806 = vsel %vm495, -1e+09, %v774
        %v807 = vsel %vm496, -1e+09, %v777
        %v808 = vsel %vm497, -1e+09, %v780
        %v809 = vsel %vm498, -1e+09, %v783
        %v810 = vsel %vm499, -1e+09, %v786
        %v811 = vsel %vm500, -1e+09, %v789
        %v812 = vsel %vm501, -1e+09, %v792
        %v813 = vsel %vm502, -1e+09, %v795
        %v814 = vsel %vm503, -1e+09, %v798
        %v815 = vmax.f32 %v799, %v800
        %v816 = vrot.slane %v815, 4
        %v817 = vmax.f32 %v815, %v816
        %v818 = vrot.slane %v817, 2
        %v819 = vmax.f32 %v817, %v818
        %v820 = vrot.slane %v819, 1
        %v821 = vmax.f32 %v819, %v820
        %v822 = vmax.f32 %v801, %v802
        %v823 = vrot.slane %v822, 4
        %v824 = vmax.f32 %v822, %v823
        %v825 = vrot.slane %v824, 2
        %v826 = vmax.f32 %v824, %v825
        %v827 = vrot.slane %v826, 1
        %v828 = vmax.f32 %v826, %v827
        %v829 = vmax.f32 %v803, %v804
        %v830 = vrot.slane %v829, 4
        %v831 = vmax.f32 %v829, %v830
        %v832 = vrot.slane %v831, 2
        %v833 = vmax.f32 %v831, %v832
        %v834 = vrot.slane %v833, 1
        %v835 = vmax.f32 %v833, %v834
        %v836 = vmax.f32 %v805, %v806
        %v837 = vrot.slane %v836, 4
        %v838 = vmax.f32 %v836, %v837
        %v839 = vrot.slane %v838, 2
        %v840 = vmax.f32 %v838, %v839
        %v841 = vrot.slane %v840, 1
        %v842 = vmax.f32 %v840, %v841
        %v843 = vmax.f32 %v807, %v808
        %v844 = vrot.slane %v843, 4
        %v845 = vmax.f32 %v843, %v844
        %v846 = vrot.slane %v845, 2
        %v847 = vmax.f32 %v845, %v846
        %v848 = vrot.slane %v847, 1
        %v849 = vmax.f32 %v847, %v848
        %v850 = vmax.f32 %v809, %v810
        %v851 = vrot.slane %v850, 4
        %v852 = vmax.f32 %v850, %v851
        %v853 = vrot.slane %v852, 2
        %v854 = vmax.f32 %v852, %v853
        %v855 = vrot.slane %v854, 1
        %v856 = vmax.f32 %v854, %v855
        %v857 = vmax.f32 %v811, %v812
        %v858 = vrot.slane %v857, 4
        %v859 = vmax.f32 %v857, %v858
        %v860 = vrot.slane %v859, 2
        %v861 = vmax.f32 %v859, %v860
        %v862 = vrot.slane %v861, 1
        %v863 = vmax.f32 %v861, %v862
        %v864 = vmax.f32 %v813, %v814
        %v865 = vrot.slane %v864, 4
        %v866 = vmax.f32 %v864, %v865
        %v867 = vrot.slane %v866, 2
        %v868 = vmax.f32 %v866, %v867
        %v869 = vrot.slane %v868, 1
        %v870 = vmax.f32 %v868, %v869
        %v871 = vsub.f32 %v799, %v821
        %v872 = vsub.f32 %v800, %v821
        %v873 = vsub.f32 %v801, %v828
        %v874 = vsub.f32 %v802, %v828
        %v875 = vsub.f32 %v803, %v835
        %v876 = vsub.f32 %v804, %v835
        %v877 = vsub.f32 %v805, %v842
        %v878 = vsub.f32 %v806, %v842
        %v879 = vsub.f32 %v807, %v849
        %v880 = vsub.f32 %v808, %v849
        %v881 = vsub.f32 %v809, %v856
        %v882 = vsub.f32 %v810, %v856
        %v883 = vsub.f32 %v811, %v863
        %v884 = vsub.f32 %v812, %v863
        %v885 = vsub.f32 %v813, %v870
        %v886 = vsub.f32 %v814, %v870
        %v887 = vmul.f32 %v871, 1.442695
        %v888 = vpow.pop %v887
        %v889 = vmul.f32 %v872, 1.442695
        %v890 = vpow.pop %v889
        %v891 = vmul.f32 %v873, 1.442695
        %v892 = vpow.pop %v891
        %v893 = vmul.f32 %v874, 1.442695
        %v894 = vpow.pop %v893
        %v895 = vmul.f32 %v875, 1.442695
        %v896 = vpow.pop %v895
        %v897 = vmul.f32 %v876, 1.442695
        %v898 = vpow.pop %v897
        %v899 = vmul.f32 %v877, 1.442695
        %v900 = vpow.pop %v899
        %v901 = vmul.f32 %v878, 1.442695
        %v902 = vpow.pop %v901
        %v903 = vmul.f32 %v879, 1.442695
        %v904 = vpow.pop %v903
        %v905 = vmul.f32 %v880, 1.442695
        %v906 = vpow.pop %v905
        %v907 = vmul.f32 %v881, 1.442695
        %v908 = vpow.pop %v907
        %v909 = vmul.f32 %v882, 1.442695
        %v910 = vpow.pop %v909
        %v911 = vmul.f32 %v883, 1.442695
        %v912 = vpow.pop %v911
        %v913 = vmul.f32 %v884, 1.442695
        %v914 = vpow.pop %v913
        %v915 = vmul.f32 %v885, 1.442695
        %v916 = vpow.pop %v915
        %v917 = vmul.f32 %v886, 1.442695
        %v918 = vpow.pop %v917
        %v919 = vadd.f32 %v888, %v890
        %v920 = vrot.slane %v919, 4
        %v921 = vadd.f32 %v919, %v920
        %v922 = vrot.slane %v921, 2
        %v923 = vadd.f32 %v921, %v922
        %v924 = vrot.slane %v923, 1
        %v925 = vadd.f32 %v923, %v924
        %v926 = vadd.f32 %v892, %v894
        %v927 = vrot.slane %v926, 4
        %v928 = vadd.f32 %v926, %v927
        %v929 = vrot.slane %v928, 2
        %v930 = vadd.f32 %v928, %v929
        %v931 = vrot.slane %v930, 1
        %v932 = vadd.f32 %v930, %v931
        %v933 = vadd.f32 %v896, %v898
        %v934 = vrot.slane %v933, 4
        %v935 = vadd.f32 %v933, %v934
        %v936 = vrot.slane %v935, 2
        %v937 = vadd.f32 %v935, %v936
        %v938 = vrot.slane %v937, 1
        %v939 = vadd.f32 %v937, %v938
        %v940 = vadd.f32 %v900, %v902
        %v941 = vrot.slane %v940, 4
        %v942 = vadd.f32 %v940, %v941
        %v943 = vrot.slane %v942, 2
        %v944 = vadd.f32 %v942, %v943
        %v945 = vrot.slane %v944, 1
        %v946 = vadd.f32 %v944, %v945
        %v947 = vadd.f32 %v904, %v906
        %v948 = vrot.slane %v947, 4
        %v949 = vadd.f32 %v947, %v948
        %v950 = vrot.slane %v949, 2
        %v951 = vadd.f32 %v949, %v950
        %v952 = vrot.slane %v951, 1
        %v953 = vadd.f32 %v951, %v952
        %v954 = vadd.f32 %v908, %v910
        %v955 = vrot.slane %v954, 4
        %v956 = vadd.f32 %v954, %v955
        %v957 = vrot.slane %v956, 2
        %v958 = vadd.f32 %v956, %v957
        %v959 = vrot.slane %v958, 1
        %v960 = vadd.f32 %v958, %v959
        %v961 = vadd.f32 %v912, %v914
        %v962 = vrot.slane %v961, 4
        %v963 = vadd.f32 %v961, %v962
        %v964 = vrot.slane %v963, 2
        %v965 = vadd.f32 %v963, %v964
        %v966 = vrot.slane %v965, 1
        %v967 = vadd.f32 %v965, %v966
        %v968 = vadd.f32 %v916, %v918
        %v969 = vrot.slane %v968, 4
        %v970 = vadd.f32 %v968, %v969
        %v971 = vrot.slane %v970, 2
        %v972 = vadd.f32 %v970, %v971
        %v973 = vrot.slane %v972, 1
        %v974 = vadd.f32 %v972, %v973
        %v975 = vrcp.pop %v925
        %v976 = vrcp.pop %v932
        %v977 = vrcp.pop %v939
        %v978 = vrcp.pop %v946
        %v979 = vrcp.pop %v953
        %v980 = vrcp.pop %v960
        %v981 = vrcp.pop %v967
        %v982 = vrcp.pop %v974
        %v983 = vmul.f32 %v888, %v975
        %v984 = vmul.f32 %v890, %v975
        %v985 = vmul.f32 %v892, %v976
        %v986 = vmul.f32 %v894, %v976
        %v987 = vmul.f32 %v896, %v977
        %v988 = vmul.f32 %v898, %v977
        %v989 = vmul.f32 %v900, %v978
        %v990 = vmul.f32 %v902, %v978
        %v991 = vmul.f32 %v904, %v979
        %v992 = vmul.f32 %v906, %v979
        %v993 = vmul.f32 %v908, %v980
        %v994 = vmul.f32 %v910, %v980
        %v995 = vmul.f32 %v912, %v981
        %v996 = vmul.f32 %v914, %v981
        %v997 = vmul.f32 %v916, %v982
        %v998 = vmul.f32 %v918, %v982
        %v999 = vmul.f32 %v983, %v407
        %v1000 = vmul.f32 %v984, %v408
        %v1001 = vmul.f32 %v985, %v409
        %v1002 = vmul.f32 %v986, %v410
        %v1003 = vmul.f32 %v987, %v411
        %v1004 = vmul.f32 %v988, %v412
        %v1005 = vmul.f32 %v989, %v413
        %v1006 = vmul.f32 %v990, %v414
        %v1007 = vmul.f32 %v991, %v415
        %v1008 = vmul.f32 %v992, %v416
        %v1009 = vmul.f32 %v993, %v417
        %v1010 = vmul.f32 %v994, %v418
        %v1011 = vmul.f32 %v995, %v419
        %v1012 = vmul.f32 %v996, %v420
        %v1013 = vmul.f32 %v997, %v421
        %v1014 = vmul.f32 %v998, %v422
        %v1015 = vsel %vm439, %v999, 0.0
        %v1016 = vsel %vm439, %v1000, 0.0
        %v1017 = vadd.f32 %v1015, %v1016
        %v1018 = vrot.slane %v1017, 4
        %v1019 = vadd.f32 %v1017, %v1018
        %v1020 = vrot.slane %v1019, 2
        %v1021 = vadd.f32 %v1019, %v1020
        %v1022 = vrot.slane %v1021, 1
        %v1023 = vadd.f32 %v1021, %v1022
        %v1024 = vsel %vm439, %v1001, 0.0
        %v1025 = vsel %vm439, %v1002, 0.0
        %v1026 = vadd.f32 %v1024, %v1025
        %v1027 = vrot.slane %v1026, 4
        %v1028 = vadd.f32 %v1026, %v1027
        %v1029 = vrot.slane %v1028, 2
        %v1030 = vadd.f32 %v1028, %v1029
        %v1031 = vrot.slane %v1030, 1
        %v1032 = vadd.f32 %v1030, %v1031
        %v1033 = vsel %vm439, %v1003, 0.0
        %v1034 = vsel %vm439, %v1004, 0.0
        %v1035 = vadd.f32 %v1033, %v1034
        %v1036 = vrot.slane %v1035, 4
        %v1037 = vadd.f32 %v1035, %v1036
        %v1038 = vrot.slane %v1037, 2
        %v1039 = vadd.f32 %v1037, %v1038
        %v1040 = vrot.slane %v1039, 1
        %v1041 = vadd.f32 %v1039, %v1040
        %v1042 = vsel %vm439, %v1005, 0.0
        %v1043 = vsel %vm439, %v1006, 0.0
        %v1044 = vadd.f32 %v1042, %v1043
        %v1045 = vrot.slane %v1044, 4
        %v1046 = vadd.f32 %v1044, %v1045
        %v1047 = vrot.slane %v1046, 2
        %v1048 = vadd.f32 %v1046, %v1047
        %v1049 = vrot.slane %v1048, 1
        %v1050 = vadd.f32 %v1048, %v1049
        %v1051 = vsel %vm439, %v1007, 0.0
        %v1052 = vsel %vm439, %v1008, 0.0
        %v1053 = vadd.f32 %v1051, %v1052
        %v1054 = vrot.slane %v1053, 4
        %v1055 = vadd.f32 %v1053, %v1054
        %v1056 = vrot.slane %v1055, 2
        %v1057 = vadd.f32 %v1055, %v1056
        %v1058 = vrot.slane %v1057, 1
        %v1059 = vadd.f32 %v1057, %v1058
        %v1060 = vsel %vm439, %v1009, 0.0
        %v1061 = vsel %vm439, %v1010, 0.0
        %v1062 = vadd.f32 %v1060, %v1061
        %v1063 = vrot.slane %v1062, 4
        %v1064 = vadd.f32 %v1062, %v1063
        %v1065 = vrot.slane %v1064, 2
        %v1066 = vadd.f32 %v1064, %v1065
        %v1067 = vrot.slane %v1066, 1
        %v1068 = vadd.f32 %v1066, %v1067
        %v1069 = vsel %vm439, %v1011, 0.0
        %v1070 = vsel %vm439, %v1012, 0.0
        %v1071 = vadd.f32 %v1069, %v1070
        %v1072 = vrot.slane %v1071, 4
        %v1073 = vadd.f32 %v1071, %v1072
        %v1074 = vrot.slane %v1073, 2
        %v1075 = vadd.f32 %v1073, %v1074
        %v1076 = vrot.slane %v1075, 1
        %v1077 = vadd.f32 %v1075, %v1076
        %v1078 = vsel %vm439, %v1013, 0.0
        %v1079 = vsel %vm439, %v1014, 0.0
        %v1080 = vadd.f32 %v1078, %v1079
        %v1081 = vrot.slane %v1080, 4
        %v1082 = vadd.f32 %v1080, %v1081
        %v1083 = vrot.slane %v1082, 2
        %v1084 = vadd.f32 %v1082, %v1083
        %v1085 = vrot.slane %v1084, 1
        %v1086 = vadd.f32 %v1084, %v1085
        %v1087 = vld [vmem:[%s4] sm:$0xff]
        %v1088 = vld [vmem:[%s4 + $0x8] sm:$0xff]
        %v1089 = vld [vmem:[%s4 + $0x10] sm:$0xff]
        %v1090 = vld [vmem:[%s4 + $0x18] sm:$0xff]
        %v1091 = vld [vmem:[%s4 + $0x20] sm:$0xff]
        %v1092 = vld [vmem:[%s4 + $0x28] sm:$0xff]
        %v1093 = vld [vmem:[%s4 + $0x30] sm:$0xff]
        %v1094 = vld [vmem:[%s4 + $0x38] sm:$0xff]
        %v1095 = vld [vmem:[%s5] sm:$0x1]
        %v1097 = vlaneseq
        %v1098 = vshrl.u32 %v1097, 7
        %v1099 = vsub.s32 0, %v1098
        %v1100 = vrot.slane %v1095, %v1099
        %vm1110 = vcmask 1041409
        %v1111 = vsel %vm1110, %v1032, %v1023
        %vm1112 = vcmask 1042434
        %v1113 = vsel %vm1112, %v1041, %v1111
        %vm1114 = vcmask 1043459
        %v1115 = vsel %vm1114, %v1050, %v1113
        %vm1116 = vcmask 1044484
        %v1117 = vsel %vm1116, %v1059, %v1115
        %vm1118 = vcmask 1045509
        %v1119 = vsel %vm1118, %v1068, %v1117
        %vm1120 = vcmask 1046534
        %v1121 = vsel %vm1120, %v1077, %v1119
        %vm1122 = vcmask 1047559
        %v1123 = vsel %vm1122, %v1086, %v1121
        %v1124 = vsel %vm439, %v1123, 0
        %1126 = vmatprep.subr.mxu0 0.0
        %1127 = vmatpush1.msra.mxu0 0.0
        %1128 = vmatprep.subr.mxu0 0.0
        %1129 = vmatpush1.msra.mxu0 0.0
        %1130 = vmatprep.subr.mxu0 0.0
        %1131 = vmatpush1.msra.mxu0 0.0
        %1132 = vmatprep.subr.mxu0 0.0
        %1133 = vmatpush1.msra.mxu0 0.0
        %1134 = vmatprep.subr.mxu0 0.0
        %1135 = vmatpush1.msra.mxu0 0.0
        %1136 = vmatprep.subr.mxu0 0.0
        %1137 = vmatpush1.msra.mxu0 0.0
        %1138 = vmatprep.subr.mxu0 0.0
        %1139 = vmatpush1.msra.mxu0 0.0
        %1140 = vmatprep.subr.mxu0 0.0
        %1141 = vmatpush1.msra.mxu0 0.0
        %1142 = vmatprep.subr.mxu0 0.0
        %1143 = vmatpush1.msra.mxu0 %v1094
        %1144 = vmatprep.subr.mxu0 0.0
        %1145 = vmatpush1.msra.mxu0 %v1093
        %1146 = vmatprep.subr.mxu0 0.0
        %1147 = vmatpush1.msra.mxu0 %v1092
        %1148 = vmatprep.subr.mxu0 0.0
        %1149 = vmatpush1.msra.mxu0 %v1091
        %1150 = vmatprep.subr.mxu0 0.0
        %1151 = vmatpush1.msra.mxu0 %v1090
        %1152 = vmatprep.subr.mxu0 0.0
        %1153 = vmatpush1.msra.mxu0 %v1089
        %1154 = vmatprep.subr.mxu0 0.0
        %1155 = vmatpush1.msra.mxu0 %v1088
        %1156 = vmatprep.subr.mxu0 0.0
        %1157 = vmatpush1.msra.mxu0 %v1087
        %1158 = vmatprep.subr.mxu0 0.0
        %1159 = vmatpush2.msra.mxu0 0.0
        %1160 = vmatprep.subr.mxu0 0.0
        %1161 = vmatpush2.msra.mxu0 0.0
        %1162 = vmatprep.subr.mxu0 0.0
        %1163 = vmatpush2.msra.mxu0 0.0
        %1164 = vmatprep.subr.mxu0 0.0
        %1165 = vmatpush2.msra.mxu0 0.0
        %1166 = vmatprep.subr.mxu0 0.0
        %1167 = vmatpush2.msra.mxu0 0.0
        %1168 = vmatprep.subr.mxu0 0.0
        %1169 = vmatpush2.msra.mxu0 0.0
        %1170 = vmatprep.subr.mxu0 0.0
        %1171 = vmatpush2.msra.mxu0 0.0
        %1172 = vmatprep.subr.mxu0 0.0
        %1173 = vmatpush2.msra.mxu0 0.0
        %1174 = vmatprep.subr.mxu0 0.0
        %1175 = vmatpush2.msra.mxu0 0.0
        %1176 = vmatprep.subr.mxu0 0.0
        %1177 = vmatpush2.msra.mxu0 0.0
        %1178 = vmatprep.subr.mxu0 0.0
        %1179 = vmatpush2.msra.mxu0 0.0
        %1180 = vmatprep.subr.mxu0 0.0
        %1181 = vmatpush2.msra.mxu0 0.0
        %1182 = vmatprep.subr.mxu0 0.0
        %1183 = vmatpush2.msra.mxu0 0.0
        %1184 = vmatprep.subr.mxu0 0.0
        %1185 = vmatpush2.msra.mxu0 0.0
        %1186 = vmatprep.subr.mxu0 0.0
        %1187 = vmatpush2.msra.mxu0 0.0
        %1188 = vmatprep.subr.mxu0 0.0
        %1189 = vmatpush2.msra.mxu0 0.0
        %1190 = vmatprep.mubr.f32.mxu0 0.0
        %1191 = vmatmul.mubr.f32.gmra.mxu0 %v1124
        %v1192 = vpop.f32.mrf.mxu0
        %v1193 = vadd.f32 %v1100, %v1192
        %v1194 = vpop.f32.mrf.mxu0
        %1195 = vdwg.mxu0
        %v1196 = vsel %vm439, %v1193, 0.0
        %1197 = vadd.xlane.f32.xlu0 %v1196
        %v1198 = vpop.xlane.xlu0 %1197
        %v1199 = vrcp.pop 64.0
        %v1200 = vmul.f32 %v1198, %v1199
        %v1201 = vsub.f32 %v1193, %v1200
        %v1202 = vmul.f32 %v1201, %v1201
        %v1203 = vsel %vm439, %v1202, 0.0
        %1204 = vadd.xlane.f32.xlu0 %v1203
        %v1205 = vpop.xlane.xlu0 %1204
        %v1206 = vmul.f32 %v1205, 0.015873017
        %v1207 = vrsqrt.pop %v1206
        %v1208 = vmul.f32 %v1206, %v1207
        %vm1209 = vcmp.eq.f32.partialorder %v1206, inf
        %v1210 = vsel %vm1209, %v1206, %v1208
        %vm1211 = vcmp.eq.f32.partialorder %v1206, 0.0
        %v1212 = vand.u32 %v1206, 2147483648
        %v1213 = vsel %vm1211, %v1212, %v1210
        %v1214 = vadd.f32 %v1213, 1e-06
        %v1215 = vrcp.pop %v1214
        %v1216 = vld [vmem:[%s6] sm:$0x1]
        %v1218 = vlaneseq
        %v1219 = vshrl.u32 %v1218, 7
        %v1220 = vsub.s32 0, %v1219
        %v1221 = vrot.slane %v1216, %v1220
        %v1223 = vmul.f32 %v1221, %v1201
        %v1224 = vmul.f32 %v1223, %v1215
        %v1225 = vld [vmem:[%s7] sm:$0x1]
        %v1227 = vlaneseq
        %v1228 = vshrl.u32 %v1227, 7
        %v1229 = vsub.s32 0, %v1228
        %v1230 = vrot.slane %v1225, %v1229
        %v1232 = vadd.f32 %v1224, %v1230
        %v1233 = vld [vmem:[%s8] sm:$0xff]
        %v1234 = vld [vmem:[%s8 + $0x8] sm:$0xff]
        %v1235 = vld [vmem:[%s8 + $0x10] sm:$0xff]
        %v1236 = vld [vmem:[%s8 + $0x18] sm:$0xff]
        %v1237 = vld [vmem:[%s8 + $0x20] sm:$0xff]
        %v1238 = vld [vmem:[%s8 + $0x28] sm:$0xff]
        %v1239 = vld [vmem:[%s8 + $0x30] sm:$0xff]
        %v1240 = vld [vmem:[%s8 + $0x38] sm:$0xff]
        %v1242 = vsel %vm439, %v1232, 0
        %1244 = vmatprep.subr.mxu0 0.0
        %1245 = vmatpush1.msra.mxu0 0.0
        %1246 = vmatprep.subr.mxu0 0.0
        %1247 = vmatpush1.msra.mxu0 0.0
        %1248 = vmatprep.subr.mxu0 0.0
        %1249 = vmatpush1.msra.mxu0 0.0
        %1250 = vmatprep.subr.mxu0 0.0
        %1251 = vmatpush1.msra.mxu0 0.0
        %1252 = vmatprep.subr.mxu0 0.0
        %1253 = vmatpush1.msra.mxu0 0.0
        %1254 = vmatprep.subr.mxu0 0.0
        %1255 = vmatpush1.msra.mxu0 0.0
        %1256 = vmatprep.subr.mxu0 0.0
        %1257 = vmatpush1.msra.mxu0 0.0
        %1258 = vmatprep.subr.mxu0 0.0
        %1259 = vmatpush1.msra.mxu0 0.0
        %1260 = vmatprep.subr.mxu0 0.0
        %1261 = vmatpush1.msra.mxu0 %v1240
        %1262 = vmatprep.subr.mxu0 0.0
        %1263 = vmatpush1.msra.mxu0 %v1239
        %1264 = vmatprep.subr.mxu0 0.0
        %1265 = vmatpush1.msra.mxu0 %v1238
        %1266 = vmatprep.subr.mxu0 0.0
        %1267 = vmatpush1.msra.mxu0 %v1237
        %1268 = vmatprep.subr.mxu0 0.0
        %1269 = vmatpush1.msra.mxu0 %v1236
        %1270 = vmatprep.subr.mxu0 0.0
        %1271 = vmatpush1.msra.mxu0 %v1235
        %1272 = vmatprep.subr.mxu0 0.0
        %1273 = vmatpush1.msra.mxu0 %v1234
        %1274 = vmatprep.subr.mxu0 0.0
        %1275 = vmatpush1.msra.mxu0 %v1233
        %1276 = vmatprep.subr.mxu0 0.0
        %1277 = vmatpush2.msra.mxu0 0.0
        %1278 = vmatprep.subr.mxu0 0.0
        %1279 = vmatpush2.msra.mxu0 0.0
        %1280 = vmatprep.subr.mxu0 0.0
        %1281 = vmatpush2.msra.mxu0 0.0
        %1282 = vmatprep.subr.mxu0 0.0
        %1283 = vmatpush2.msra.mxu0 0.0
        %1284 = vmatprep.subr.mxu0 0.0
        %1285 = vmatpush2.msra.mxu0 0.0
        %1286 = vmatprep.subr.mxu0 0.0
        %1287 = vmatpush2.msra.mxu0 0.0
        %1288 = vmatprep.subr.mxu0 0.0
        %1289 = vmatpush2.msra.mxu0 0.0
        %1290 = vmatprep.subr.mxu0 0.0
        %1291 = vmatpush2.msra.mxu0 0.0
        %1292 = vmatprep.subr.mxu0 0.0
        %1293 = vmatpush2.msra.mxu0 0.0
        %1294 = vmatprep.subr.mxu0 0.0
        %1295 = vmatpush2.msra.mxu0 0.0
        %1296 = vmatprep.subr.mxu0 0.0
        %1297 = vmatpush2.msra.mxu0 0.0
        %1298 = vmatprep.subr.mxu0 0.0
        %1299 = vmatpush2.msra.mxu0 0.0
        %1300 = vmatprep.subr.mxu0 0.0
        %1301 = vmatpush2.msra.mxu0 0.0
        %1302 = vmatprep.subr.mxu0 0.0
        %1303 = vmatpush2.msra.mxu0 0.0
        %1304 = vmatprep.subr.mxu0 0.0
        %1305 = vmatpush2.msra.mxu0 0.0
        %1306 = vmatprep.subr.mxu0 0.0
        %1307 = vmatpush2.msra.mxu0 0.0
        %1308 = vmatprep.mubr.f32.mxu0 0.0
        %1309 = vmatmul.mubr.f32.gmra.mxu0 %v1242
        %v1310 = vpop.f32.mrf.mxu0
        %v1311 = vadd.f32 0.0, %v1310
        %v1312 = vpop.f32.mrf.mxu0
        %1313 = vdwg.mxu0
        %v1314 = vmax.f32 %v1311, 0.0
        %v1315 = vld [vmem:[%s9] sm:$0xff]
        %v1316 = vld [vmem:[%s9 + $0x8] sm:$0xff]
        %v1317 = vld [vmem:[%s9 + $0x10] sm:$0xff]
        %v1318 = vld [vmem:[%s9 + $0x18] sm:$0xff]
        %v1319 = vld [vmem:[%s10] sm:$0x1]
        %v1321 = vlaneseq
        %v1322 = vshrl.u32 %v1321, 7
        %v1323 = vsub.s32 0, %v1322
        %v1324 = vrot.slane %v1319, %v1323
        %vm1326 = vcmask 261120
        %v1328 = vsel %vm1326, %v1314, 0
        %1330 = vmatprep.subr.mxu0 0.0
        %1331 = vmatpush1.msra.mxu0 0.0
        %1332 = vmatprep.subr.mxu0 0.0
        %1333 = vmatpush1.msra.mxu0 0.0
        %1334 = vmatprep.subr.mxu0 0.0
        %1335 = vmatpush1.msra.mxu0 0.0
        %1336 = vmatprep.subr.mxu0 0.0
        %1337 = vmatpush1.msra.mxu0 0.0
        %1338 = vmatprep.subr.mxu0 0.0
        %1339 = vmatpush1.msra.mxu0 0.0
        %1340 = vmatprep.subr.mxu0 0.0
        %1341 = vmatpush1.msra.mxu0 0.0
        %1342 = vmatprep.subr.mxu0 0.0
        %1343 = vmatpush1.msra.mxu0 0.0
        %1344 = vmatprep.subr.mxu0 0.0
        %1345 = vmatpush1.msra.mxu0 0.0
        %1346 = vmatprep.subr.mxu0 0.0
        %1347 = vmatpush1.msra.mxu0 0.0
        %1348 = vmatprep.subr.mxu0 0.0
        %1349 = vmatpush1.msra.mxu0 0.0
        %1350 = vmatprep.subr.mxu0 0.0
        %1351 = vmatpush1.msra.mxu0 0.0
        %1352 = vmatprep.subr.mxu0 0.0
        %1353 = vmatpush1.msra.mxu0 0.0
        %1354 = vmatprep.subr.mxu0 0.0
        %1355 = vmatpush1.msra.mxu0 %v1318
        %1356 = vmatprep.subr.mxu0 0.0
        %1357 = vmatpush1.msra.mxu0 %v1317
        %1358 = vmatprep.subr.mxu0 0.0
        %1359 = vmatpush1.msra.mxu0 %v1316
        %1360 = vmatprep.subr.mxu0 0.0
        %1361 = vmatpush1.msra.mxu0 %v1315
        %1362 = vmatprep.subr.mxu0 0.0
        %1363 = vmatpush2.msra.mxu0 0.0
        %1364 = vmatprep.subr.mxu0 0.0
        %1365 = vmatpush2.msra.mxu0 0.0
        %1366 = vmatprep.subr.mxu0 0.0
        %1367 = vmatpush2.msra.mxu0 0.0
        %1368 = vmatprep.subr.mxu0 0.0
        %1369 = vmatpush2.msra.mxu0 0.0
        %1370 = vmatprep.subr.mxu0 0.0
        %1371 = vmatpush2.msra.mxu0 0.0
        %1372 = vmatprep.subr.mxu0 0.0
        %1373 = vmatpush2.msra.mxu0 0.0
        %1374 = vmatprep.subr.mxu0 0.0
        %1375 = vmatpush2.msra.mxu0 0.0
        %1376 = vmatprep.subr.mxu0 0.0
        %1377 = vmatpush2.msra.mxu0 0.0
        %1378 = vmatprep.subr.mxu0 0.0
        %1379 = vmatpush2.msra.mxu0 0.0
        %1380 = vmatprep.subr.mxu0 0.0
        %1381 = vmatpush2.msra.mxu0 0.0
        %1382 = vmatprep.subr.mxu0 0.0
        %1383 = vmatpush2.msra.mxu0 0.0
        %1384 = vmatprep.subr.mxu0 0.0
        %1385 = vmatpush2.msra.mxu0 0.0
        %1386 = vmatprep.subr.mxu0 0.0
        %1387 = vmatpush2.msra.mxu0 0.0
        %1388 = vmatprep.subr.mxu0 0.0
        %1389 = vmatpush2.msra.mxu0 0.0
        %1390 = vmatprep.subr.mxu0 0.0
        %1391 = vmatpush2.msra.mxu0 0.0
        %1392 = vmatprep.subr.mxu0 0.0
        %1393 = vmatpush2.msra.mxu0 0.0
        %1394 = vmatprep.mubr.f32.mxu0 0.0
        %1395 = vmatmul.mubr.f32.gmra.mxu0 %v1328
        %v1396 = vpop.f32.mrf.mxu0
        %v1397 = vadd.f32 %v1324, %v1396
        %v1398 = vpop.f32.mrf.mxu0
        %1399 = vdwg.mxu0
        %vm1400 = vcmask 31744
        %v1401 = vsel %vm1400, %v1397, -inf
        %1402 = vmax.xlane.f32.xlu0 %v1401
        %v1403 = vpop.xlane.xlu0 %1402
        %v1404 = vsub.f32 %v1397, %v1403
        %v1405 = vmul.f32 %v1404, 1.442695
        %v1406 = vpow.pop %v1405
        %v1407 = vsel %vm1400, %v1406, 0.0
        %1408 = vadd.xlane.f32.xlu0 %v1407
        %v1409 = vpop.xlane.xlu0 %1408
        %v1410 = vrcp.pop %v1409
        %v1411 = vmul.f32 %v1406, %v1410
        %1412 = vst.msk [vmem:[%s406] sm:$0xff] %vm1400, %v1411
        %p1413 = scmp.lt.s32.totalorder %s25, 1
        %s1414 = scalar_select %p1413, %s25, 1
        %s1415 = smul.addr %s1414, 8
        %s1416 = scalar_lea.vmem %s11, %s1415
        // Predicated region
        $region69: #{tpu_custom_call.1} parent=63 // pred_check
          %p1417 = pneg %p279
        $region70: #{tpu_custom_call.1} parent=63 // pred_check_branch
          %1419 = sbr.rel (%p1417) target = $region72
        $region71: #{tpu_custom_call.1} parent=63 // pred_region
          _
        $region72: #{tpu_custom_call.1} parent=63 // pred_fallthru
          _
      $region64: #{tpu_custom_call.1} parent=5 // pred_fallthru
        _
      %p1420 = scmp.le.s32.totalorder 2, %s20
      // Predicated region
      $region73: #{tpu_custom_call.1} parent=5 // pred_check
        %p1421 = pneg %p1420
      $region74: #{tpu_custom_call.1} parent=5 // pred_check_branch
        %1423 = sbr.rel (%p1421) target = $region76
      $region75: #{tpu_custom_call.1} parent=5 // pred_region
        %s1424 = ssub.s32 %s20, 2
        // Predicated region
        $region77: #{tpu_custom_call.1} parent=75 // pred_check
          %p1425 = pneg %p285
        $region78: #{tpu_custom_call.1} parent=75 // pred_check_branch
          %1427 = sbr.rel (%p1425) target = $region80
        $region79: #{tpu_custom_call.1} parent=75 // pred_region
          %p1428 = scmp.lt.s32.totalorder %s26, 1
          %s1429 = scalar_select %p1428, %s26, 1
          %s1430 = smul.addr %s1429, 8
          %s1431 = scalar_lea.vmem %s11, %s1430
        $region80: #{tpu_custom_call.1} parent=75 // pred_fallthru
          _
      $region76: #{tpu_custom_call.1} parent=5 // pred_fallthru
        _
    $region6: #{tpu_custom_call.1} parent=1 // loop_footer
      %s24 = sadd.s32 1, %s20
    $region7: #{tpu_custom_call.1} parent=1 // loop_footer_branch
      %19 = sbr.rel target = $region3
    $region8: #{tpu_custom_call.1} parent=1 // loop_exit
      _
    %1432 = vsyncpa [#allocation3], 1
    %s1433 = scalar_lea.sflag [#allocation3], 1
    %1434 = vsyncpa %s1433, 1

</llo_original>
